<compile_context>
chip_gen: v7x
topology: tpu7x:2x2x1
jax: 0.10.0
libtpu: 0.0.40
codegen_flags: <defaults>
</compile_context>

<pallas_src>
import functools

import jax
import jax.numpy as jnp
from jax.experimental import pallas as pl
from jax.experimental.pallas import tpu as pltpu


# ---------------------------------------------------------------------------
# In-kernel helpers (trace-time Python, fully unrolled)
# ---------------------------------------------------------------------------

def _shifted_tap(val, dh, dw, H, W, fill, w_idx):
    """Spatially shifted copy of `val` (C, H*W): result[:, h*W+w] =
    val[:, (h+dh)*W + (w+dw)] when in-bounds, `fill` otherwise.

    The shift is a static lane slice + lane concat with a fill block (covers
    the H boundary); a lane mask covers the W boundary for dw != 0. This is
    the in-kernel equivalent of 'same' padding.
    """
    C, HW = val.shape
    off = dh * W + dw
    if off == 0:
        s = val
    elif off > 0:
        s = jnp.concatenate(
            [val[:, off:], jnp.full((C, off), fill, val.dtype)], axis=1)
    else:
        s = jnp.concatenate(
            [jnp.full((C, -off), fill, val.dtype), val[:, :HW + off]], axis=1)
    if dw != 0:
        valid = (w_idx + dw >= 0) & (w_idx + dw < W)
        s = jnp.where(valid, s, jnp.full_like(s, fill))
    return s


def _taps(val, K, H, W, fill, w_idx):
    """List of K*K shifted copies, tap-major order (kh, kw)."""
    pad = (K - 1) // 2
    out = []
    for kh in range(K):
        for kw in range(K):
            out.append(_shifted_tap(val, kh - pad, kw - pad, H, W, fill, w_idx))
    return out


# ---------------------------------------------------------------------------
# Fused Inception kernel (one batch sample per grid step)
# ---------------------------------------------------------------------------

def _inception_kernel(H, W, c1, c2, c3, c4,
                      x_ref, w1_ref, b1_ref, w22_ref, b22_ref,
                      w32_ref, b32_ref, w42_ref, b42_ref, o_ref):
    """Layout: channels in sublanes, flattened H*W in lanes.

    x_ref  : (Cin, H*W)               bf16
    w1_ref : (c1+c2[0]+c3[0], Cin)    bf16  fused 1x1 weights [p1_1|p2_1|p3_1]
    b1_ref : (c1+c2[0]+c3[0], 1)      f32
    w22_ref: (c2[1], 9*c2[0])         bf16  3x3 weights, rows (kh,kw,ci)
    w32_ref: (c3[1], 25*c3[0])        bf16  5x5 weights
    w42_ref: (c4, Cin)                bf16  1x1 after maxpool
    b*_ref : (cX, 1)                  f32
    o_ref  : (c1+c2[1]+c3[1]+c4, H*W) f32   concat via channel-offset writes
    """
    f32 = jnp.float32
    bf16 = jnp.bfloat16
    HW = H * W
    w_idx = jax.lax.broadcasted_iota(jnp.int32, (1, HW), 1) % W

    x_bf = x_ref[...]                       # (Cin, HW) bf16

    # Branches 1 / 2a / 3a: the three 1x1 convs on x fused into one MXU matmul.
    y = jnp.dot(w1_ref[...], x_bf, preferred_element_type=f32)
    y = jnp.maximum(y + b1_ref[...], 0.0)   # bias + ReLU in f32 (VPU)
    p1 = y[0:c1, :]
    p2a = y[c1:c1 + c2[0], :]
    p3a = y[c1 + c2[0]:c1 + c2[0] + c3[0], :]

    # Branch 2: 3x3 conv via im2col -> single matmul, contracting 9*c2[0].
    col2 = jnp.concatenate(_taps(p2a, 3, H, W, 0.0, w_idx), axis=0)
    p2 = jnp.dot(w22_ref[...], col2.astype(bf16), preferred_element_type=f32)
    p2 = jnp.maximum(p2 + b22_ref[...], 0.0)

    # Branch 3: 5x5 conv via im2col -> single matmul, contracting 25*c3[0].
    col3 = jnp.concatenate(_taps(p3a, 5, H, W, 0.0, w_idx), axis=0)
    p3 = jnp.dot(w32_ref[...], col3.astype(bf16), preferred_element_type=f32)
    p3 = jnp.maximum(p3 + b32_ref[...], 0.0)

    # Branch 4: 3x3 / stride 1 / pad 1 max-pool (f32 VPU) then 1x1 conv.
    mp_taps = _taps(x_bf.astype(f32), 3, H, W, -jnp.inf, w_idx)
    mp = mp_taps[0]
    for t in mp_taps[1:]:
        mp = jnp.maximum(mp, t)
    p4 = jnp.dot(w42_ref[...], mp.astype(bf16), preferred_element_type=f32)
    p4 = jnp.maximum(p4 + b42_ref[...], 0.0)

    # torch.cat(dim=1): channel-offset stores into the single output ref.
    o0 = c1
    o1 = o0 + c2[1]
    o2 = o1 + c3[1]
    o_ref[0:o0, :] = p1
    o_ref[o0:o1, :] = p2
    o_ref[o1:o2, :] = p3
    o_ref[o2:, :] = p4


# ---------------------------------------------------------------------------
# Wrapper
# ---------------------------------------------------------------------------

def inception_forward(params, x_nchw):
    """Matches Inception.forward: NCHW in, NCHW out, channel concat on dim 1."""
    N, Cin, H, W = x_nchw.shape
    HW = H * W

    w_p1, b_p1 = params["p1_1"]
    w_p21, b_p21 = params["p2_1"]
    w_p22, b_p22 = params["p2_2"]
    w_p31, b_p31 = params["p3_1"]
    w_p32, b_p32 = params["p3_2"]
    w_p42, b_p42 = params["p4_2"]

    c1 = w_p1.shape[-1]
    c2 = (w_p21.shape[-1], w_p22.shape[-1])
    c3 = (w_p31.shape[-1], w_p32.shape[-1])
    c4 = w_p42.shape[-1]
    c_out = c1 + c2[1] + c3[1] + c4

    def mat(w_hwio):
        # HWIO (K,K,Cin,Cout) -> (Cout, K*K*Cin); rows of the contracting dim
        # are ordered (kh, kw, ci), matching the in-kernel im2col order.
        K, _, ci, co = w_hwio.shape
        return w_hwio.reshape(K * K * ci, co).T.astype(jnp.bfloat16)

    # Fuse the three 1x1 convs that read x into one weight / bias.
    w1 = jnp.concatenate([mat(w_p1), mat(w_p21), mat(w_p31)], axis=0)
    b1 = jnp.concatenate([b_p1, b_p21, b_p31]).reshape(-1, 1).astype(jnp.float32)
    w22, b22 = mat(w_p22), b_p22.reshape(-1, 1).astype(jnp.float32)
    w32, b32 = mat(w_p32), b_p32.reshape(-1, 1).astype(jnp.float32)
    w42, b42 = mat(w_p42), b_p42.reshape(-1, 1).astype(jnp.float32)

    # Channels -> sublanes, flattened spatial -> lanes (lane-dense, 256).
    x_flat = x_nchw.reshape(N, Cin, HW).astype(jnp.bfloat16)

    kern = functools.partial(_inception_kernel, H, W, c1, c2, c3, c4)
    full2d = lambda a: pl.BlockSpec(a.shape, lambda n: (0, 0))

    out = pl.pallas_call(
        kern,
        out_shape=jax.ShapeDtypeStruct((N, c_out, HW), jnp.float32),
        grid=(N,),
        in_specs=[
            pl.BlockSpec((None, Cin, HW), lambda n: (n, 0, 0)),
            full2d(w1), full2d(b1),
            full2d(w22), full2d(b22),
            full2d(w32), full2d(b32),
            full2d(w42), full2d(b42),
        ],
        out_specs=pl.BlockSpec((None, c_out, HW), lambda n: (n, 0, 0)),
        compiler_params=pltpu.CompilerParams(
            dimension_semantics=("parallel",)),
    )(x_flat, w1, b1, w22, b22, w32, b32, w42, b42)

    return out.reshape(N, c_out, H, W)


# ---------------------------------------------------------------------------
# Parameter init (HWIO layout) and pure-JAX reference for validation
# ---------------------------------------------------------------------------

def init_inception_params(key, in_channels, c1, c2, c3, c4):
    def mk(key, K, cin, cout):
        kw_, kb_ = jax.random.split(key)
        w = jax.random.normal(kw_, (K, K, cin, cout), jnp.float32) * 0.1
        b = jax.random.normal(kb_, (cout,), jnp.float32) * 0.1
        return w, b

    ks = jax.random.split(key, 6)
    return {
        "p1_1": mk(ks[0], 1, in_channels, c1),
        "p2_1": mk(ks[1], 1, in_channels, c2[0]),
        "p2_2": mk(ks[2], 3, c2[0], c2[1]),
        "p3_1": mk(ks[3], 1, in_channels, c3[0]),
        "p3_2": mk(ks[4], 5, c3[0], c3[1]),
        "p4_2": mk(ks[5], 1, in_channels, c4),
    }


def _ref_conv_relu(x_nhwc, w_hwio, b, K):
    pad = (K - 1) // 2
    y = jax.lax.conv_general_dilated(
        x_nhwc, w_hwio, window_strides=(1, 1),
        padding=[(pad, pad), (pad, pad)],
        dimension_numbers=("NHWC", "HWIO", "NHWC"))
    return jnp.maximum(y + b, 0.0)


def _ref_maxpool3(x_nhwc):
    return jax.lax.reduce_window(
        x_nhwc, -jnp.inf, jax.lax.max,
        window_dimensions=(1, 3, 3, 1), window_strides=(1, 1, 1, 1),
        padding=[(0, 0), (1, 1), (1, 1), (0, 0)])


def _ref_forward(params, x_nchw):
    x = jnp.transpose(x_nchw, (0, 2, 3, 1))
    p1 = _ref_conv_relu(x, *params["p1_1"], K=1)
    p2 = _ref_conv_relu(_ref_conv_relu(x, *params["p2_1"], K=1),
                        *params["p2_2"], K=3)
    p3 = _ref_conv_relu(_ref_conv_relu(x, *params["p3_1"], K=1),
                        *params["p3_2"], K=5)
    p4 = _ref_conv_relu(_ref_maxpool3(x), *params["p4_2"], K=1)
    out = jnp.concatenate([p1, p2, p3, p4], axis=-1)
    return jnp.transpose(out, (0, 3, 1, 2))


# ---------------------------------------------------------------------------

if __name__ == "__main__":
    key = jax.random.PRNGKey(0)
    k_x, k_p = jax.random.split(key)

    # Small shapes consistent with the module: N=2, Cin=4, H=W=16.
    N, Cin, H, W = 2, 4, 16, 16
    c1, c2, c3, c4 = 8, (4, 8), (4, 8), 8

    x = jax.random.normal(k_x, (N, Cin, H, W), jnp.float32)
    params = init_inception_params(k_p, Cin, c1, c2, c3, c4)

    fwd = jax.jit(inception_forward)
    out = jax.block_until_ready(fwd(params, x))

    expected_shape = (N, c1 + c2[1] + c3[1] + c4, H, W)
    assert out.shape == expected_shape, (out.shape, expected_shape)

    ref = _ref_forward(params, x)
    # Tolerance loosened vs f32 reference because MXU operands are bf16
    # (accumulation is still f32).
    max_err = float(jnp.max(jnp.abs(out - ref)))
    assert jnp.allclose(out, ref, atol=5e-2, rtol=5e-2), max_err

    print("KERNEL_OK")
</pallas_src>

<mosaic_0001>
module attributes {stable_mosaic.version = 11 : i64} {
  func.func @_inception_kernel(%arg0: i32, %arg1: memref<1x4x256xbf16, #tpu.memory_space<vmem>>, %arg2: memref<16x4xbf16, #tpu.memory_space<vmem>>, %arg3: memref<16x1xf32, #tpu.memory_space<vmem>>, %arg4: memref<8x36xbf16, #tpu.memory_space<vmem>>, %arg5: memref<8x1xf32, #tpu.memory_space<vmem>>, %arg6: memref<8x100xbf16, #tpu.memory_space<vmem>>, %arg7: memref<8x1xf32, #tpu.memory_space<vmem>>, %arg8: memref<8x4xbf16, #tpu.memory_space<vmem>>, %arg9: memref<8x1xf32, #tpu.memory_space<vmem>>, %arg10: memref<1x32x256xf32, #tpu.memory_space<vmem>>) attributes {dimension_semantics = [#tpu.dimension_semantics<parallel>], iteration_bounds = array<i64: 2>, scalar_prefetch = 0 : i64, scratch_operands = 0 : i64, tpu.core_type = #tpu.core_type<tc>, window_params = [{transform_indices = @transform_0, window_bounds = array<i64: 1, 4, 256>}, {pipeline_mode = #tpu.pipeline_mode<synchronous>, transform_indices = @transform_1, window_bounds = array<i64: 16, 4>}, {pipeline_mode = #tpu.pipeline_mode<synchronous>, transform_indices = @transform_2, window_bounds = array<i64: 16, 1>}, {pipeline_mode = #tpu.pipeline_mode<synchronous>, transform_indices = @transform_3, window_bounds = array<i64: 8, 36>}, {pipeline_mode = #tpu.pipeline_mode<synchronous>, transform_indices = @transform_4, window_bounds = array<i64: 8, 1>}, {pipeline_mode = #tpu.pipeline_mode<synchronous>, transform_indices = @transform_5, window_bounds = array<i64: 8, 100>}, {pipeline_mode = #tpu.pipeline_mode<synchronous>, transform_indices = @transform_6, window_bounds = array<i64: 8, 1>}, {pipeline_mode = #tpu.pipeline_mode<synchronous>, transform_indices = @transform_7, window_bounds = array<i64: 8, 4>}, {pipeline_mode = #tpu.pipeline_mode<synchronous>, transform_indices = @transform_8, window_bounds = array<i64: 8, 1>}, {transform_indices = @transform_9, window_bounds = array<i64: 1, 32, 256>}]} {
    %0 = tpu.iota {dimensions = array<i32: 1>} : vector<1x256xi32>
    %c16_i32 = arith.constant 16 : i32
    %c0_i32 = arith.constant 0 : i32
    %1 = arith.cmpi eq, %c16_i32, %c0_i32 : i32
    %c1_i32 = arith.constant 1 : i32
    %2 = arith.select %1, %c1_i32, %c16_i32 : i32
    %3 = vector.broadcast %2 : i32 to vector<1x256xi32>
    %4 = arith.remsi %0, %3 : vector<1x256xi32>
    %c0_i32_0 = arith.constant 0 : i32
    %5 = vector.broadcast %c0_i32_0 : i32 to vector<1x256xi32>
    %6 = arith.cmpi ne, %4, %5 : vector<1x256xi32>
    %c0_i32_1 = arith.constant 0 : i32
    %7 = vector.broadcast %c0_i32_1 : i32 to vector<1x256xi32>
    %8 = arith.cmpi slt, %4, %7 : vector<1x256xi32>
    %c0_i32_2 = arith.constant 0 : i32
    %9 = arith.cmpi slt, %2, %c0_i32_2 : i32
    %10 = vector.broadcast %9 : i1 to vector<1x256xi1>
    %11 = vector.broadcast %10 : vector<1x256xi1> to vector<1x256xi1>
    %12 = arith.xori %8, %11 : vector<1x256xi1>
    %13 = arith.andi %12, %6 : vector<1x256xi1>
    %14 = vector.broadcast %2 : i32 to vector<1x256xi32>
    %15 = arith.addi %4, %14 : vector<1x256xi32>
    %16 = arith.select %13, %15, %4 : vector<1x256xi1>, vector<1x256xi32>
    %c0 = arith.constant 0 : index
    %c0_3 = arith.constant 0 : index
    %c0_4 = arith.constant 0 : index
    %17 = vector.load %arg1[%c0, %c0_3, %c0_4] : memref<1x4x256xbf16, #tpu.memory_space<vmem>>, vector<1x4x256xbf16>
    %18 = vector.shape_cast %17 : vector<1x4x256xbf16> to vector<4x256xbf16>
    %c0_5 = arith.constant 0 : index
    %c0_6 = arith.constant 0 : index
    %19 = vector.load %arg2[%c0_5, %c0_6] : memref<16x4xbf16, #tpu.memory_space<vmem>>, vector<16x4xbf16>
    %cst = arith.constant dense<0.000000e+00> : vector<16x256xf32>
    %20 = tpu.matmul %19, %18, %cst {dimension_numbers = #tpu.dot_dimension_numbers<[1], [0], [0], [1], [0, 0, 1, 1], [], []>} : vector<16x4xbf16>, vector<4x256xbf16>, vector<16x256xf32> -> vector<16x256xf32>
    %c0_7 = arith.constant 0 : index
    %c0_8 = arith.constant 0 : index
    %21 = vector.load %arg3[%c0_7, %c0_8] : memref<16x1xf32, #tpu.memory_space<vmem>>, vector<16x1xf32>
    %22 = vector.broadcast %21 : vector<16x1xf32> to vector<16x256xf32>
    %23 = arith.addf %20, %22 : vector<16x256xf32>
    %cst_9 = arith.constant 0.000000e+00 : f32
    %24 = vector.broadcast %cst_9 : f32 to vector<16x256xf32>
    %25 = arith.maximumf %23, %24 : vector<16x256xf32>
    %26 = vector.extract_strided_slice %25 {offsets = [0, 0], sizes = [8, 256], strides = [1, 1]} : vector<16x256xf32> to vector<8x256xf32>
    %27 = vector.extract_strided_slice %25 {offsets = [8, 0], sizes = [4, 256], strides = [1, 1]} : vector<16x256xf32> to vector<4x256xf32>
    %28 = vector.extract_strided_slice %25 {offsets = [12, 0], sizes = [4, 256], strides = [1, 1]} : vector<16x256xf32> to vector<4x256xf32>
    %cst_10 = arith.constant 0.000000e+00 : f32
    %29 = vector.broadcast %cst_10 : f32 to vector<4x17xf32>
    %30 = vector.extract_strided_slice %27 {offsets = [0, 0], sizes = [4, 239], strides = [1, 1]} : vector<4x256xf32> to vector<4x239xf32>
    %31 = tpu.concatenate %29, %30 in 1 : vector<4x17xf32>, vector<4x239xf32> -> vector<4x256xf32>
    %c-1_i32 = arith.constant -1 : i32
    %32 = vector.broadcast %c-1_i32 : i32 to vector<1x256xi32>
    %33 = arith.addi %16, %32 : vector<1x256xi32>
    %c0_i32_11 = arith.constant 0 : i32
    %34 = vector.broadcast %c0_i32_11 : i32 to vector<1x256xi32>
    %35 = arith.cmpi sge, %33, %34 : vector<1x256xi32>
    %c-1_i32_12 = arith.constant -1 : i32
    %36 = vector.broadcast %c-1_i32_12 : i32 to vector<1x256xi32>
    %37 = arith.addi %16, %36 : vector<1x256xi32>
    %c16_i32_13 = arith.constant 16 : i32
    %38 = vector.broadcast %c16_i32_13 : i32 to vector<1x256xi32>
    %39 = arith.cmpi slt, %37, %38 : vector<1x256xi32>
    %40 = arith.andi %35, %39 : vector<1x256xi1>
    %cst_14 = arith.constant 0.000000e+00 : f32
    %41 = vector.broadcast %cst_14 : f32 to vector<4x256xf32>
    %42 = vector.shape_cast %40 : vector<1x256xi1> to vector<1x256xi1>
    %43 = vector.broadcast %42 : vector<1x256xi1> to vector<4x256xi1>
    %44 = arith.select %43, %31, %41 : vector<4x256xi1>, vector<4x256xf32>
    %cst_15 = arith.constant 0.000000e+00 : f32
    %45 = vector.broadcast %cst_15 : f32 to vector<4x16xf32>
    %46 = vector.extract_strided_slice %27 {offsets = [0, 0], sizes = [4, 240], strides = [1, 1]} : vector<4x256xf32> to vector<4x240xf32>
    %47 = tpu.concatenate %45, %46 in 1 : vector<4x16xf32>, vector<4x240xf32> -> vector<4x256xf32>
    %cst_16 = arith.constant 0.000000e+00 : f32
    %48 = vector.broadcast %cst_16 : f32 to vector<4x15xf32>
    %49 = vector.extract_strided_slice %27 {offsets = [0, 0], sizes = [4, 241], strides = [1, 1]} : vector<4x256xf32> to vector<4x241xf32>
    %50 = tpu.concatenate %48, %49 in 1 : vector<4x15xf32>, vector<4x241xf32> -> vector<4x256xf32>
    %c1_i32_17 = arith.constant 1 : i32
    %51 = vector.broadcast %c1_i32_17 : i32 to vector<1x256xi32>
    %52 = arith.addi %16, %51 : vector<1x256xi32>
    %c0_i32_18 = arith.constant 0 : i32
    %53 = vector.broadcast %c0_i32_18 : i32 to vector<1x256xi32>
    %54 = arith.cmpi sge, %52, %53 : vector<1x256xi32>
    %c1_i32_19 = arith.constant 1 : i32
    %55 = vector.broadcast %c1_i32_19 : i32 to vector<1x256xi32>
    %56 = arith.addi %16, %55 : vector<1x256xi32>
    %c16_i32_20 = arith.constant 16 : i32
    %57 = vector.broadcast %c16_i32_20 : i32 to vector<1x256xi32>
    %58 = arith.cmpi slt, %56, %57 : vector<1x256xi32>
    %59 = arith.andi %54, %58 : vector<1x256xi1>
    %cst_21 = arith.constant 0.000000e+00 : f32
    %60 = vector.broadcast %cst_21 : f32 to vector<4x256xf32>
    %61 = vector.shape_cast %59 : vector<1x256xi1> to vector<1x256xi1>
    %62 = vector.broadcast %61 : vector<1x256xi1> to vector<4x256xi1>
    %63 = arith.select %62, %50, %60 : vector<4x256xi1>, vector<4x256xf32>
    %cst_22 = arith.constant 0.000000e+00 : f32
    %64 = vector.broadcast %cst_22 : f32 to vector<4x1xf32>
    %65 = vector.extract_strided_slice %27 {offsets = [0, 0], sizes = [4, 255], strides = [1, 1]} : vector<4x256xf32> to vector<4x255xf32>
    %66 = tpu.concatenate %64, %65 in 1 : vector<4x1xf32>, vector<4x255xf32> -> vector<4x256xf32>
    %c-1_i32_23 = arith.constant -1 : i32
    %67 = vector.broadcast %c-1_i32_23 : i32 to vector<1x256xi32>
    %68 = arith.addi %16, %67 : vector<1x256xi32>
    %c0_i32_24 = arith.constant 0 : i32
    %69 = vector.broadcast %c0_i32_24 : i32 to vector<1x256xi32>
    %70 = arith.cmpi sge, %68, %69 : vector<1x256xi32>
    %c-1_i32_25 = arith.constant -1 : i32
    %71 = vector.broadcast %c-1_i32_25 : i32 to vector<1x256xi32>
    %72 = arith.addi %16, %71 : vector<1x256xi32>
    %c16_i32_26 = arith.constant 16 : i32
    %73 = vector.broadcast %c16_i32_26 : i32 to vector<1x256xi32>
    %74 = arith.cmpi slt, %72, %73 : vector<1x256xi32>
    %75 = arith.andi %70, %74 : vector<1x256xi1>
    %cst_27 = arith.constant 0.000000e+00 : f32
    %76 = vector.broadcast %cst_27 : f32 to vector<4x256xf32>
    %77 = vector.shape_cast %75 : vector<1x256xi1> to vector<1x256xi1>
    %78 = vector.broadcast %77 : vector<1x256xi1> to vector<4x256xi1>
    %79 = arith.select %78, %66, %76 : vector<4x256xi1>, vector<4x256xf32>
    %80 = vector.extract_strided_slice %27 {offsets = [0, 1], sizes = [4, 255], strides = [1, 1]} : vector<4x256xf32> to vector<4x255xf32>
    %cst_28 = arith.constant 0.000000e+00 : f32
    %81 = vector.broadcast %cst_28 : f32 to vector<4x1xf32>
    %82 = tpu.concatenate %80, %81 in 1 : vector<4x255xf32>, vector<4x1xf32> -> vector<4x256xf32>
    %c1_i32_29 = arith.constant 1 : i32
    %83 = vector.broadcast %c1_i32_29 : i32 to vector<1x256xi32>
    %84 = arith.addi %16, %83 : vector<1x256xi32>
    %c0_i32_30 = arith.constant 0 : i32
    %85 = vector.broadcast %c0_i32_30 : i32 to vector<1x256xi32>
    %86 = arith.cmpi sge, %84, %85 : vector<1x256xi32>
    %c1_i32_31 = arith.constant 1 : i32
    %87 = vector.broadcast %c1_i32_31 : i32 to vector<1x256xi32>
    %88 = arith.addi %16, %87 : vector<1x256xi32>
    %c16_i32_32 = arith.constant 16 : i32
    %89 = vector.broadcast %c16_i32_32 : i32 to vector<1x256xi32>
    %90 = arith.cmpi slt, %88, %89 : vector<1x256xi32>
    %91 = arith.andi %86, %90 : vector<1x256xi1>
    %cst_33 = arith.constant 0.000000e+00 : f32
    %92 = vector.broadcast %cst_33 : f32 to vector<4x256xf32>
    %93 = vector.shape_cast %91 : vector<1x256xi1> to vector<1x256xi1>
    %94 = vector.broadcast %93 : vector<1x256xi1> to vector<4x256xi1>
    %95 = arith.select %94, %82, %92 : vector<4x256xi1>, vector<4x256xf32>
    %96 = vector.extract_strided_slice %27 {offsets = [0, 15], sizes = [4, 241], strides = [1, 1]} : vector<4x256xf32> to vector<4x241xf32>
    %cst_34 = arith.constant 0.000000e+00 : f32
    %97 = vector.broadcast %cst_34 : f32 to vector<4x15xf32>
    %98 = tpu.concatenate %96, %97 in 1 : vector<4x241xf32>, vector<4x15xf32> -> vector<4x256xf32>
    %c-1_i32_35 = arith.constant -1 : i32
    %99 = vector.broadcast %c-1_i32_35 : i32 to vector<1x256xi32>
    %100 = arith.addi %16, %99 : vector<1x256xi32>
    %c0_i32_36 = arith.constant 0 : i32
    %101 = vector.broadcast %c0_i32_36 : i32 to vector<1x256xi32>
    %102 = arith.cmpi sge, %100, %101 : vector<1x256xi32>
    %c-1_i32_37 = arith.constant -1 : i32
    %103 = vector.broadcast %c-1_i32_37 : i32 to vector<1x256xi32>
    %104 = arith.addi %16, %103 : vector<1x256xi32>
    %c16_i32_38 = arith.constant 16 : i32
    %105 = vector.broadcast %c16_i32_38 : i32 to vector<1x256xi32>
    %106 = arith.cmpi slt, %104, %105 : vector<1x256xi32>
    %107 = arith.andi %102, %106 : vector<1x256xi1>
    %cst_39 = arith.constant 0.000000e+00 : f32
    %108 = vector.broadcast %cst_39 : f32 to vector<4x256xf32>
    %109 = vector.shape_cast %107 : vector<1x256xi1> to vector<1x256xi1>
    %110 = vector.broadcast %109 : vector<1x256xi1> to vector<4x256xi1>
    %111 = arith.select %110, %98, %108 : vector<4x256xi1>, vector<4x256xf32>
    %112 = vector.extract_strided_slice %27 {offsets = [0, 16], sizes = [4, 240], strides = [1, 1]} : vector<4x256xf32> to vector<4x240xf32>
    %cst_40 = arith.constant 0.000000e+00 : f32
    %113 = vector.broadcast %cst_40 : f32 to vector<4x16xf32>
    %114 = tpu.concatenate %112, %113 in 1 : vector<4x240xf32>, vector<4x16xf32> -> vector<4x256xf32>
    %115 = vector.extract_strided_slice %27 {offsets = [0, 17], sizes = [4, 239], strides = [1, 1]} : vector<4x256xf32> to vector<4x239xf32>
    %cst_41 = arith.constant 0.000000e+00 : f32
    %116 = vector.broadcast %cst_41 : f32 to vector<4x17xf32>
    %117 = tpu.concatenate %115, %116 in 1 : vector<4x239xf32>, vector<4x17xf32> -> vector<4x256xf32>
    %c1_i32_42 = arith.constant 1 : i32
    %118 = vector.broadcast %c1_i32_42 : i32 to vector<1x256xi32>
    %119 = arith.addi %16, %118 : vector<1x256xi32>
    %c0_i32_43 = arith.constant 0 : i32
    %120 = vector.broadcast %c0_i32_43 : i32 to vector<1x256xi32>
    %121 = arith.cmpi sge, %119, %120 : vector<1x256xi32>
    %c1_i32_44 = arith.constant 1 : i32
    %122 = vector.broadcast %c1_i32_44 : i32 to vector<1x256xi32>
    %123 = arith.addi %16, %122 : vector<1x256xi32>
    %c16_i32_45 = arith.constant 16 : i32
    %124 = vector.broadcast %c16_i32_45 : i32 to vector<1x256xi32>
    %125 = arith.cmpi slt, %123, %124 : vector<1x256xi32>
    %126 = arith.andi %121, %125 : vector<1x256xi1>
    %cst_46 = arith.constant 0.000000e+00 : f32
    %127 = vector.broadcast %cst_46 : f32 to vector<4x256xf32>
    %128 = vector.shape_cast %126 : vector<1x256xi1> to vector<1x256xi1>
    %129 = vector.broadcast %128 : vector<1x256xi1> to vector<4x256xi1>
    %130 = arith.select %129, %117, %127 : vector<4x256xi1>, vector<4x256xf32>
    %131 = tpu.concatenate %44, %47, %63, %79, %27, %95, %111, %114, %130 in 0 : vector<4x256xf32>, vector<4x256xf32>, vector<4x256xf32>, vector<4x256xf32>, vector<4x256xf32>, vector<4x256xf32>, vector<4x256xf32>, vector<4x256xf32>, vector<4x256xf32> -> vector<36x256xf32>
    %c0_47 = arith.constant 0 : index
    %c0_48 = arith.constant 0 : index
    %132 = vector.load %arg4[%c0_47, %c0_48] : memref<8x36xbf16, #tpu.memory_space<vmem>>, vector<8x36xbf16>
    %133 = arith.truncf %131 : vector<36x256xf32> to vector<36x256xbf16>
    %cst_49 = arith.constant dense<0.000000e+00> : vector<8x256xf32>
    %134 = tpu.matmul %132, %133, %cst_49 {dimension_numbers = #tpu.dot_dimension_numbers<[1], [0], [0], [1], [0, 0, 1, 1], [], []>} : vector<8x36xbf16>, vector<36x256xbf16>, vector<8x256xf32> -> vector<8x256xf32>
    %c0_50 = arith.constant 0 : index
    %c0_51 = arith.constant 0 : index
    %135 = vector.load %arg5[%c0_50, %c0_51] : memref<8x1xf32, #tpu.memory_space<vmem>>, vector<8x1xf32>
    %136 = vector.broadcast %135 : vector<8x1xf32> to vector<8x256xf32>
    %137 = arith.addf %134, %136 : vector<8x256xf32>
    %cst_52 = arith.constant 0.000000e+00 : f32
    %138 = vector.broadcast %cst_52 : f32 to vector<8x256xf32>
    %139 = arith.maximumf %137, %138 : vector<8x256xf32>
    %cst_53 = arith.constant 0.000000e+00 : f32
    %140 = vector.broadcast %cst_53 : f32 to vector<4x34xf32>
    %141 = vector.extract_strided_slice %28 {offsets = [0, 0], sizes = [4, 222], strides = [1, 1]} : vector<4x256xf32> to vector<4x222xf32>
    %142 = tpu.concatenate %140, %141 in 1 : vector<4x34xf32>, vector<4x222xf32> -> vector<4x256xf32>
    %c-2_i32 = arith.constant -2 : i32
    %143 = vector.broadcast %c-2_i32 : i32 to vector<1x256xi32>
    %144 = arith.addi %16, %143 : vector<1x256xi32>
    %c0_i32_54 = arith.constant 0 : i32
    %145 = vector.broadcast %c0_i32_54 : i32 to vector<1x256xi32>
    %146 = arith.cmpi sge, %144, %145 : vector<1x256xi32>
    %c-2_i32_55 = arith.constant -2 : i32
    %147 = vector.broadcast %c-2_i32_55 : i32 to vector<1x256xi32>
    %148 = arith.addi %16, %147 : vector<1x256xi32>
    %c16_i32_56 = arith.constant 16 : i32
    %149 = vector.broadcast %c16_i32_56 : i32 to vector<1x256xi32>
    %150 = arith.cmpi slt, %148, %149 : vector<1x256xi32>
    %151 = arith.andi %146, %150 : vector<1x256xi1>
    %cst_57 = arith.constant 0.000000e+00 : f32
    %152 = vector.broadcast %cst_57 : f32 to vector<4x256xf32>
    %153 = vector.shape_cast %151 : vector<1x256xi1> to vector<1x256xi1>
    %154 = vector.broadcast %153 : vector<1x256xi1> to vector<4x256xi1>
    %155 = arith.select %154, %142, %152 : vector<4x256xi1>, vector<4x256xf32>
    %cst_58 = arith.constant 0.000000e+00 : f32
    %156 = vector.broadcast %cst_58 : f32 to vector<4x33xf32>
    %157 = vector.extract_strided_slice %28 {offsets = [0, 0], sizes = [4, 223], strides = [1, 1]} : vector<4x256xf32> to vector<4x223xf32>
    %158 = tpu.concatenate %156, %157 in 1 : vector<4x33xf32>, vector<4x223xf32> -> vector<4x256xf32>
    %c-1_i32_59 = arith.constant -1 : i32
    %159 = vector.broadcast %c-1_i32_59 : i32 to vector<1x256xi32>
    %160 = arith.addi %16, %159 : vector<1x256xi32>
    %c0_i32_60 = arith.constant 0 : i32
    %161 = vector.broadcast %c0_i32_60 : i32 to vector<1x256xi32>
    %162 = arith.cmpi sge, %160, %161 : vector<1x256xi32>
    %c-1_i32_61 = arith.constant -1 : i32
    %163 = vector.broadcast %c-1_i32_61 : i32 to vector<1x256xi32>
    %164 = arith.addi %16, %163 : vector<1x256xi32>
    %c16_i32_62 = arith.constant 16 : i32
    %165 = vector.broadcast %c16_i32_62 : i32 to vector<1x256xi32>
    %166 = arith.cmpi slt, %164, %165 : vector<1x256xi32>
    %167 = arith.andi %162, %166 : vector<1x256xi1>
    %cst_63 = arith.constant 0.000000e+00 : f32
    %168 = vector.broadcast %cst_63 : f32 to vector<4x256xf32>
    %169 = vector.shape_cast %167 : vector<1x256xi1> to vector<1x256xi1>
    %170 = vector.broadcast %169 : vector<1x256xi1> to vector<4x256xi1>
    %171 = arith.select %170, %158, %168 : vector<4x256xi1>, vector<4x256xf32>
    %cst_64 = arith.constant 0.000000e+00 : f32
    %172 = vector.broadcast %cst_64 : f32 to vector<4x32xf32>
    %173 = vector.extract_strided_slice %28 {offsets = [0, 0], sizes = [4, 224], strides = [1, 1]} : vector<4x256xf32> to vector<4x224xf32>
    %174 = tpu.concatenate %172, %173 in 1 : vector<4x32xf32>, vector<4x224xf32> -> vector<4x256xf32>
    %cst_65 = arith.constant 0.000000e+00 : f32
    %175 = vector.broadcast %cst_65 : f32 to vector<4x31xf32>
    %176 = vector.extract_strided_slice %28 {offsets = [0, 0], sizes = [4, 225], strides = [1, 1]} : vector<4x256xf32> to vector<4x225xf32>
    %177 = tpu.concatenate %175, %176 in 1 : vector<4x31xf32>, vector<4x225xf32> -> vector<4x256xf32>
    %c1_i32_66 = arith.constant 1 : i32
    %178 = vector.broadcast %c1_i32_66 : i32 to vector<1x256xi32>
    %179 = arith.addi %16, %178 : vector<1x256xi32>
    %c0_i32_67 = arith.constant 0 : i32
    %180 = vector.broadcast %c0_i32_67 : i32 to vector<1x256xi32>
    %181 = arith.cmpi sge, %179, %180 : vector<1x256xi32>
    %c1_i32_68 = arith.constant 1 : i32
    %182 = vector.broadcast %c1_i32_68 : i32 to vector<1x256xi32>
    %183 = arith.addi %16, %182 : vector<1x256xi32>
    %c16_i32_69 = arith.constant 16 : i32
    %184 = vector.broadcast %c16_i32_69 : i32 to vector<1x256xi32>
    %185 = arith.cmpi slt, %183, %184 : vector<1x256xi32>
    %186 = arith.andi %181, %185 : vector<1x256xi1>
    %cst_70 = arith.constant 0.000000e+00 : f32
    %187 = vector.broadcast %cst_70 : f32 to vector<4x256xf32>
    %188 = vector.shape_cast %186 : vector<1x256xi1> to vector<1x256xi1>
    %189 = vector.broadcast %188 : vector<1x256xi1> to vector<4x256xi1>
    %190 = arith.select %189, %177, %187 : vector<4x256xi1>, vector<4x256xf32>
    %cst_71 = arith.constant 0.000000e+00 : f32
    %191 = vector.broadcast %cst_71 : f32 to vector<4x30xf32>
    %192 = vector.extract_strided_slice %28 {offsets = [0, 0], sizes = [4, 226], strides = [1, 1]} : vector<4x256xf32> to vector<4x226xf32>
    %193 = tpu.concatenate %191, %192 in 1 : vector<4x30xf32>, vector<4x226xf32> -> vector<4x256xf32>
    %c2_i32 = arith.constant 2 : i32
    %194 = vector.broadcast %c2_i32 : i32 to vector<1x256xi32>
    %195 = arith.addi %16, %194 : vector<1x256xi32>
    %c0_i32_72 = arith.constant 0 : i32
    %196 = vector.broadcast %c0_i32_72 : i32 to vector<1x256xi32>
    %197 = arith.cmpi sge, %195, %196 : vector<1x256xi32>
    %c2_i32_73 = arith.constant 2 : i32
    %198 = vector.broadcast %c2_i32_73 : i32 to vector<1x256xi32>
    %199 = arith.addi %16, %198 : vector<1x256xi32>
    %c16_i32_74 = arith.constant 16 : i32
    %200 = vector.broadcast %c16_i32_74 : i32 to vector<1x256xi32>
    %201 = arith.cmpi slt, %199, %200 : vector<1x256xi32>
    %202 = arith.andi %197, %201 : vector<1x256xi1>
    %cst_75 = arith.constant 0.000000e+00 : f32
    %203 = vector.broadcast %cst_75 : f32 to vector<4x256xf32>
    %204 = vector.shape_cast %202 : vector<1x256xi1> to vector<1x256xi1>
    %205 = vector.broadcast %204 : vector<1x256xi1> to vector<4x256xi1>
    %206 = arith.select %205, %193, %203 : vector<4x256xi1>, vector<4x256xf32>
    %cst_76 = arith.constant 0.000000e+00 : f32
    %207 = vector.broadcast %cst_76 : f32 to vector<4x18xf32>
    %208 = vector.extract_strided_slice %28 {offsets = [0, 0], sizes = [4, 238], strides = [1, 1]} : vector<4x256xf32> to vector<4x238xf32>
    %209 = tpu.concatenate %207, %208 in 1 : vector<4x18xf32>, vector<4x238xf32> -> vector<4x256xf32>
    %c-2_i32_77 = arith.constant -2 : i32
    %210 = vector.broadcast %c-2_i32_77 : i32 to vector<1x256xi32>
    %211 = arith.addi %16, %210 : vector<1x256xi32>
    %c0_i32_78 = arith.constant 0 : i32
    %212 = vector.broadcast %c0_i32_78 : i32 to vector<1x256xi32>
    %213 = arith.cmpi sge, %211, %212 : vector<1x256xi32>
    %c-2_i32_79 = arith.constant -2 : i32
    %214 = vector.broadcast %c-2_i32_79 : i32 to vector<1x256xi32>
    %215 = arith.addi %16, %214 : vector<1x256xi32>
    %c16_i32_80 = arith.constant 16 : i32
    %216 = vector.broadcast %c16_i32_80 : i32 to vector<1x256xi32>
    %217 = arith.cmpi slt, %215, %216 : vector<1x256xi32>
    %218 = arith.andi %213, %217 : vector<1x256xi1>
    %cst_81 = arith.constant 0.000000e+00 : f32
    %219 = vector.broadcast %cst_81 : f32 to vector<4x256xf32>
    %220 = vector.shape_cast %218 : vector<1x256xi1> to vector<1x256xi1>
    %221 = vector.broadcast %220 : vector<1x256xi1> to vector<4x256xi1>
    %222 = arith.select %221, %209, %219 : vector<4x256xi1>, vector<4x256xf32>
    %cst_82 = arith.constant 0.000000e+00 : f32
    %223 = vector.broadcast %cst_82 : f32 to vector<4x17xf32>
    %224 = vector.extract_strided_slice %28 {offsets = [0, 0], sizes = [4, 239], strides = [1, 1]} : vector<4x256xf32> to vector<4x239xf32>
    %225 = tpu.concatenate %223, %224 in 1 : vector<4x17xf32>, vector<4x239xf32> -> vector<4x256xf32>
    %c-1_i32_83 = arith.constant -1 : i32
    %226 = vector.broadcast %c-1_i32_83 : i32 to vector<1x256xi32>
    %227 = arith.addi %16, %226 : vector<1x256xi32>
    %c0_i32_84 = arith.constant 0 : i32
    %228 = vector.broadcast %c0_i32_84 : i32 to vector<1x256xi32>
    %229 = arith.cmpi sge, %227, %228 : vector<1x256xi32>
    %c-1_i32_85 = arith.constant -1 : i32
    %230 = vector.broadcast %c-1_i32_85 : i32 to vector<1x256xi32>
    %231 = arith.addi %16, %230 : vector<1x256xi32>
    %c16_i32_86 = arith.constant 16 : i32
    %232 = vector.broadcast %c16_i32_86 : i32 to vector<1x256xi32>
    %233 = arith.cmpi slt, %231, %232 : vector<1x256xi32>
    %234 = arith.andi %229, %233 : vector<1x256xi1>
    %cst_87 = arith.constant 0.000000e+00 : f32
    %235 = vector.broadcast %cst_87 : f32 to vector<4x256xf32>
    %236 = vector.shape_cast %234 : vector<1x256xi1> to vector<1x256xi1>
    %237 = vector.broadcast %236 : vector<1x256xi1> to vector<4x256xi1>
    %238 = arith.select %237, %225, %235 : vector<4x256xi1>, vector<4x256xf32>
    %cst_88 = arith.constant 0.000000e+00 : f32
    %239 = vector.broadcast %cst_88 : f32 to vector<4x16xf32>
    %240 = vector.extract_strided_slice %28 {offsets = [0, 0], sizes = [4, 240], strides = [1, 1]} : vector<4x256xf32> to vector<4x240xf32>
    %241 = tpu.concatenate %239, %240 in 1 : vector<4x16xf32>, vector<4x240xf32> -> vector<4x256xf32>
    %cst_89 = arith.constant 0.000000e+00 : f32
    %242 = vector.broadcast %cst_89 : f32 to vector<4x15xf32>
    %243 = vector.extract_strided_slice %28 {offsets = [0, 0], sizes = [4, 241], strides = [1, 1]} : vector<4x256xf32> to vector<4x241xf32>
    %244 = tpu.concatenate %242, %243 in 1 : vector<4x15xf32>, vector<4x241xf32> -> vector<4x256xf32>
    %c1_i32_90 = arith.constant 1 : i32
    %245 = vector.broadcast %c1_i32_90 : i32 to vector<1x256xi32>
    %246 = arith.addi %16, %245 : vector<1x256xi32>
    %c0_i32_91 = arith.constant 0 : i32
    %247 = vector.broadcast %c0_i32_91 : i32 to vector<1x256xi32>
    %248 = arith.cmpi sge, %246, %247 : vector<1x256xi32>
    %c1_i32_92 = arith.constant 1 : i32
    %249 = vector.broadcast %c1_i32_92 : i32 to vector<1x256xi32>
    %250 = arith.addi %16, %249 : vector<1x256xi32>
    %c16_i32_93 = arith.constant 16 : i32
    %251 = vector.broadcast %c16_i32_93 : i32 to vector<1x256xi32>
    %252 = arith.cmpi slt, %250, %251 : vector<1x256xi32>
    %253 = arith.andi %248, %252 : vector<1x256xi1>
    %cst_94 = arith.constant 0.000000e+00 : f32
    %254 = vector.broadcast %cst_94 : f32 to vector<4x256xf32>
    %255 = vector.shape_cast %253 : vector<1x256xi1> to vector<1x256xi1>
    %256 = vector.broadcast %255 : vector<1x256xi1> to vector<4x256xi1>
    %257 = arith.select %256, %244, %254 : vector<4x256xi1>, vector<4x256xf32>
    %cst_95 = arith.constant 0.000000e+00 : f32
    %258 = vector.broadcast %cst_95 : f32 to vector<4x14xf32>
    %259 = vector.extract_strided_slice %28 {offsets = [0, 0], sizes = [4, 242], strides = [1, 1]} : vector<4x256xf32> to vector<4x242xf32>
    %260 = tpu.concatenate %258, %259 in 1 : vector<4x14xf32>, vector<4x242xf32> -> vector<4x256xf32>
    %c2_i32_96 = arith.constant 2 : i32
    %261 = vector.broadcast %c2_i32_96 : i32 to vector<1x256xi32>
    %262 = arith.addi %16, %261 : vector<1x256xi32>
    %c0_i32_97 = arith.constant 0 : i32
    %263 = vector.broadcast %c0_i32_97 : i32 to vector<1x256xi32>
    %264 = arith.cmpi sge, %262, %263 : vector<1x256xi32>
    %c2_i32_98 = arith.constant 2 : i32
    %265 = vector.broadcast %c2_i32_98 : i32 to vector<1x256xi32>
    %266 = arith.addi %16, %265 : vector<1x256xi32>
    %c16_i32_99 = arith.constant 16 : i32
    %267 = vector.broadcast %c16_i32_99 : i32 to vector<1x256xi32>
    %268 = arith.cmpi slt, %266, %267 : vector<1x256xi32>
    %269 = arith.andi %264, %268 : vector<1x256xi1>
    %cst_100 = arith.constant 0.000000e+00 : f32
    %270 = vector.broadcast %cst_100 : f32 to vector<4x256xf32>
    %271 = vector.shape_cast %269 : vector<1x256xi1> to vector<1x256xi1>
    %272 = vector.broadcast %271 : vector<1x256xi1> to vector<4x256xi1>
    %273 = arith.select %272, %260, %270 : vector<4x256xi1>, vector<4x256xf32>
    %cst_101 = arith.constant 0.000000e+00 : f32
    %274 = vector.broadcast %cst_101 : f32 to vector<4x2xf32>
    %275 = vector.extract_strided_slice %28 {offsets = [0, 0], sizes = [4, 254], strides = [1, 1]} : vector<4x256xf32> to vector<4x254xf32>
    %276 = tpu.concatenate %274, %275 in 1 : vector<4x2xf32>, vector<4x254xf32> -> vector<4x256xf32>
    %c-2_i32_102 = arith.constant -2 : i32
    %277 = vector.broadcast %c-2_i32_102 : i32 to vector<1x256xi32>
    %278 = arith.addi %16, %277 : vector<1x256xi32>
    %c0_i32_103 = arith.constant 0 : i32
    %279 = vector.broadcast %c0_i32_103 : i32 to vector<1x256xi32>
    %280 = arith.cmpi sge, %278, %279 : vector<1x256xi32>
    %c-2_i32_104 = arith.constant -2 : i32
    %281 = vector.broadcast %c-2_i32_104 : i32 to vector<1x256xi32>
    %282 = arith.addi %16, %281 : vector<1x256xi32>
    %c16_i32_105 = arith.constant 16 : i32
    %283 = vector.broadcast %c16_i32_105 : i32 to vector<1x256xi32>
    %284 = arith.cmpi slt, %282, %283 : vector<1x256xi32>
    %285 = arith.andi %280, %284 : vector<1x256xi1>
    %cst_106 = arith.constant 0.000000e+00 : f32
    %286 = vector.broadcast %cst_106 : f32 to vector<4x256xf32>
    %287 = vector.shape_cast %285 : vector<1x256xi1> to vector<1x256xi1>
    %288 = vector.broadcast %287 : vector<1x256xi1> to vector<4x256xi1>
    %289 = arith.select %288, %276, %286 : vector<4x256xi1>, vector<4x256xf32>
    %cst_107 = arith.constant 0.000000e+00 : f32
    %290 = vector.broadcast %cst_107 : f32 to vector<4x1xf32>
    %291 = vector.extract_strided_slice %28 {offsets = [0, 0], sizes = [4, 255], strides = [1, 1]} : vector<4x256xf32> to vector<4x255xf32>
    %292 = tpu.concatenate %290, %291 in 1 : vector<4x1xf32>, vector<4x255xf32> -> vector<4x256xf32>
    %c-1_i32_108 = arith.constant -1 : i32
    %293 = vector.broadcast %c-1_i32_108 : i32 to vector<1x256xi32>
    %294 = arith.addi %16, %293 : vector<1x256xi32>
    %c0_i32_109 = arith.constant 0 : i32
    %295 = vector.broadcast %c0_i32_109 : i32 to vector<1x256xi32>
    %296 = arith.cmpi sge, %294, %295 : vector<1x256xi32>
    %c-1_i32_110 = arith.constant -1 : i32
    %297 = vector.broadcast %c-1_i32_110 : i32 to vector<1x256xi32>
    %298 = arith.addi %16, %297 : vector<1x256xi32>
    %c16_i32_111 = arith.constant 16 : i32
    %299 = vector.broadcast %c16_i32_111 : i32 to vector<1x256xi32>
    %300 = arith.cmpi slt, %298, %299 : vector<1x256xi32>
    %301 = arith.andi %296, %300 : vector<1x256xi1>
    %cst_112 = arith.constant 0.000000e+00 : f32
    %302 = vector.broadcast %cst_112 : f32 to vector<4x256xf32>
    %303 = vector.shape_cast %301 : vector<1x256xi1> to vector<1x256xi1>
    %304 = vector.broadcast %303 : vector<1x256xi1> to vector<4x256xi1>
    %305 = arith.select %304, %292, %302 : vector<4x256xi1>, vector<4x256xf32>
    %306 = vector.extract_strided_slice %28 {offsets = [0, 1], sizes = [4, 255], strides = [1, 1]} : vector<4x256xf32> to vector<4x255xf32>
    %cst_113 = arith.constant 0.000000e+00 : f32
    %307 = vector.broadcast %cst_113 : f32 to vector<4x1xf32>
    %308 = tpu.concatenate %306, %307 in 1 : vector<4x255xf32>, vector<4x1xf32> -> vector<4x256xf32>
    %c1_i32_114 = arith.constant 1 : i32
    %309 = vector.broadcast %c1_i32_114 : i32 to vector<1x256xi32>
    %310 = arith.addi %16, %309 : vector<1x256xi32>
    %c0_i32_115 = arith.constant 0 : i32
    %311 = vector.broadcast %c0_i32_115 : i32 to vector<1x256xi32>
    %312 = arith.cmpi sge, %310, %311 : vector<1x256xi32>
    %c1_i32_116 = arith.constant 1 : i32
    %313 = vector.broadcast %c1_i32_116 : i32 to vector<1x256xi32>
    %314 = arith.addi %16, %313 : vector<1x256xi32>
    %c16_i32_117 = arith.constant 16 : i32
    %315 = vector.broadcast %c16_i32_117 : i32 to vector<1x256xi32>
    %316 = arith.cmpi slt, %314, %315 : vector<1x256xi32>
    %317 = arith.andi %312, %316 : vector<1x256xi1>
    %cst_118 = arith.constant 0.000000e+00 : f32
    %318 = vector.broadcast %cst_118 : f32 to vector<4x256xf32>
    %319 = vector.shape_cast %317 : vector<1x256xi1> to vector<1x256xi1>
    %320 = vector.broadcast %319 : vector<1x256xi1> to vector<4x256xi1>
    %321 = arith.select %320, %308, %318 : vector<4x256xi1>, vector<4x256xf32>
    %322 = vector.extract_strided_slice %28 {offsets = [0, 2], sizes = [4, 254], strides = [1, 1]} : vector<4x256xf32> to vector<4x254xf32>
    %cst_119 = arith.constant 0.000000e+00 : f32
    %323 = vector.broadcast %cst_119 : f32 to vector<4x2xf32>
    %324 = tpu.concatenate %322, %323 in 1 : vector<4x254xf32>, vector<4x2xf32> -> vector<4x256xf32>
    %c2_i32_120 = arith.constant 2 : i32
    %325 = vector.broadcast %c2_i32_120 : i32 to vector<1x256xi32>
    %326 = arith.addi %16, %325 : vector<1x256xi32>
    %c0_i32_121 = arith.constant 0 : i32
    %327 = vector.broadcast %c0_i32_121 : i32 to vector<1x256xi32>
    %328 = arith.cmpi sge, %326, %327 : vector<1x256xi32>
    %c2_i32_122 = arith.constant 2 : i32
    %329 = vector.broadcast %c2_i32_122 : i32 to vector<1x256xi32>
    %330 = arith.addi %16, %329 : vector<1x256xi32>
    %c16_i32_123 = arith.constant 16 : i32
    %331 = vector.broadcast %c16_i32_123 : i32 to vector<1x256xi32>
    %332 = arith.cmpi slt, %330, %331 : vector<1x256xi32>
    %333 = arith.andi %328, %332 : vector<1x256xi1>
    %cst_124 = arith.constant 0.000000e+00 : f32
    %334 = vector.broadcast %cst_124 : f32 to vector<4x256xf32>
    %335 = vector.shape_cast %333 : vector<1x256xi1> to vector<1x256xi1>
    %336 = vector.broadcast %335 : vector<1x256xi1> to vector<4x256xi1>
    %337 = arith.select %336, %324, %334 : vector<4x256xi1>, vector<4x256xf32>
    %338 = vector.extract_strided_slice %28 {offsets = [0, 14], sizes = [4, 242], strides = [1, 1]} : vector<4x256xf32> to vector<4x242xf32>
    %cst_125 = arith.constant 0.000000e+00 : f32
    %339 = vector.broadcast %cst_125 : f32 to vector<4x14xf32>
    %340 = tpu.concatenate %338, %339 in 1 : vector<4x242xf32>, vector<4x14xf32> -> vector<4x256xf32>
    %c-2_i32_126 = arith.constant -2 : i32
    %341 = vector.broadcast %c-2_i32_126 : i32 to vector<1x256xi32>
    %342 = arith.addi %16, %341 : vector<1x256xi32>
    %c0_i32_127 = arith.constant 0 : i32
    %343 = vector.broadcast %c0_i32_127 : i32 to vector<1x256xi32>
    %344 = arith.cmpi sge, %342, %343 : vector<1x256xi32>
    %c-2_i32_128 = arith.constant -2 : i32
    %345 = vector.broadcast %c-2_i32_128 : i32 to vector<1x256xi32>
    %346 = arith.addi %16, %345 : vector<1x256xi32>
    %c16_i32_129 = arith.constant 16 : i32
    %347 = vector.broadcast %c16_i32_129 : i32 to vector<1x256xi32>
    %348 = arith.cmpi slt, %346, %347 : vector<1x256xi32>
    %349 = arith.andi %344, %348 : vector<1x256xi1>
    %cst_130 = arith.constant 0.000000e+00 : f32
    %350 = vector.broadcast %cst_130 : f32 to vector<4x256xf32>
    %351 = vector.shape_cast %349 : vector<1x256xi1> to vector<1x256xi1>
    %352 = vector.broadcast %351 : vector<1x256xi1> to vector<4x256xi1>
    %353 = arith.select %352, %340, %350 : vector<4x256xi1>, vector<4x256xf32>
    %354 = vector.extract_strided_slice %28 {offsets = [0, 15], sizes = [4, 241], strides = [1, 1]} : vector<4x256xf32> to vector<4x241xf32>
    %cst_131 = arith.constant 0.000000e+00 : f32
    %355 = vector.broadcast %cst_131 : f32 to vector<4x15xf32>
    %356 = tpu.concatenate %354, %355 in 1 : vector<4x241xf32>, vector<4x15xf32> -> vector<4x256xf32>
    %c-1_i32_132 = arith.constant -1 : i32
    %357 = vector.broadcast %c-1_i32_132 : i32 to vector<1x256xi32>
    %358 = arith.addi %16, %357 : vector<1x256xi32>
    %c0_i32_133 = arith.constant 0 : i32
    %359 = vector.broadcast %c0_i32_133 : i32 to vector<1x256xi32>
    %360 = arith.cmpi sge, %358, %359 : vector<1x256xi32>
    %c-1_i32_134 = arith.constant -1 : i32
    %361 = vector.broadcast %c-1_i32_134 : i32 to vector<1x256xi32>
    %362 = arith.addi %16, %361 : vector<1x256xi32>
    %c16_i32_135 = arith.constant 16 : i32
    %363 = vector.broadcast %c16_i32_135 : i32 to vector<1x256xi32>
    %364 = arith.cmpi slt, %362, %363 : vector<1x256xi32>
    %365 = arith.andi %360, %364 : vector<1x256xi1>
    %cst_136 = arith.constant 0.000000e+00 : f32
    %366 = vector.broadcast %cst_136 : f32 to vector<4x256xf32>
    %367 = vector.shape_cast %365 : vector<1x256xi1> to vector<1x256xi1>
    %368 = vector.broadcast %367 : vector<1x256xi1> to vector<4x256xi1>
    %369 = arith.select %368, %356, %366 : vector<4x256xi1>, vector<4x256xf32>
    %370 = vector.extract_strided_slice %28 {offsets = [0, 16], sizes = [4, 240], strides = [1, 1]} : vector<4x256xf32> to vector<4x240xf32>
    %cst_137 = arith.constant 0.000000e+00 : f32
    %371 = vector.broadcast %cst_137 : f32 to vector<4x16xf32>
    %372 = tpu.concatenate %370, %371 in 1 : vector<4x240xf32>, vector<4x16xf32> -> vector<4x256xf32>
    %373 = vector.extract_strided_slice %28 {offsets = [0, 17], sizes = [4, 239], strides = [1, 1]} : vector<4x256xf32> to vector<4x239xf32>
    %cst_138 = arith.constant 0.000000e+00 : f32
    %374 = vector.broadcast %cst_138 : f32 to vector<4x17xf32>
    %375 = tpu.concatenate %373, %374 in 1 : vector<4x239xf32>, vector<4x17xf32> -> vector<4x256xf32>
    %c1_i32_139 = arith.constant 1 : i32
    %376 = vector.broadcast %c1_i32_139 : i32 to vector<1x256xi32>
    %377 = arith.addi %16, %376 : vector<1x256xi32>
    %c0_i32_140 = arith.constant 0 : i32
    %378 = vector.broadcast %c0_i32_140 : i32 to vector<1x256xi32>
    %379 = arith.cmpi sge, %377, %378 : vector<1x256xi32>
    %c1_i32_141 = arith.constant 1 : i32
    %380 = vector.broadcast %c1_i32_141 : i32 to vector<1x256xi32>
    %381 = arith.addi %16, %380 : vector<1x256xi32>
    %c16_i32_142 = arith.constant 16 : i32
    %382 = vector.broadcast %c16_i32_142 : i32 to vector<1x256xi32>
    %383 = arith.cmpi slt, %381, %382 : vector<1x256xi32>
    %384 = arith.andi %379, %383 : vector<1x256xi1>
    %cst_143 = arith.constant 0.000000e+00 : f32
    %385 = vector.broadcast %cst_143 : f32 to vector<4x256xf32>
    %386 = vector.shape_cast %384 : vector<1x256xi1> to vector<1x256xi1>
    %387 = vector.broadcast %386 : vector<1x256xi1> to vector<4x256xi1>
    %388 = arith.select %387, %375, %385 : vector<4x256xi1>, vector<4x256xf32>
    %389 = vector.extract_strided_slice %28 {offsets = [0, 18], sizes = [4, 238], strides = [1, 1]} : vector<4x256xf32> to vector<4x238xf32>
    %cst_144 = arith.constant 0.000000e+00 : f32
    %390 = vector.broadcast %cst_144 : f32 to vector<4x18xf32>
    %391 = tpu.concatenate %389, %390 in 1 : vector<4x238xf32>, vector<4x18xf32> -> vector<4x256xf32>
    %c2_i32_145 = arith.constant 2 : i32
    %392 = vector.broadcast %c2_i32_145 : i32 to vector<1x256xi32>
    %393 = arith.addi %16, %392 : vector<1x256xi32>
    %c0_i32_146 = arith.constant 0 : i32
    %394 = vector.broadcast %c0_i32_146 : i32 to vector<1x256xi32>
    %395 = arith.cmpi sge, %393, %394 : vector<1x256xi32>
    %c2_i32_147 = arith.constant 2 : i32
    %396 = vector.broadcast %c2_i32_147 : i32 to vector<1x256xi32>
    %397 = arith.addi %16, %396 : vector<1x256xi32>
    %c16_i32_148 = arith.constant 16 : i32
    %398 = vector.broadcast %c16_i32_148 : i32 to vector<1x256xi32>
    %399 = arith.cmpi slt, %397, %398 : vector<1x256xi32>
    %400 = arith.andi %395, %399 : vector<1x256xi1>
    %cst_149 = arith.constant 0.000000e+00 : f32
    %401 = vector.broadcast %cst_149 : f32 to vector<4x256xf32>
    %402 = vector.shape_cast %400 : vector<1x256xi1> to vector<1x256xi1>
    %403 = vector.broadcast %402 : vector<1x256xi1> to vector<4x256xi1>
    %404 = arith.select %403, %391, %401 : vector<4x256xi1>, vector<4x256xf32>
    %405 = vector.extract_strided_slice %28 {offsets = [0, 30], sizes = [4, 226], strides = [1, 1]} : vector<4x256xf32> to vector<4x226xf32>
    %cst_150 = arith.constant 0.000000e+00 : f32
    %406 = vector.broadcast %cst_150 : f32 to vector<4x30xf32>
    %407 = tpu.concatenate %405, %406 in 1 : vector<4x226xf32>, vector<4x30xf32> -> vector<4x256xf32>
    %c-2_i32_151 = arith.constant -2 : i32
    %408 = vector.broadcast %c-2_i32_151 : i32 to vector<1x256xi32>
    %409 = arith.addi %16, %408 : vector<1x256xi32>
    %c0_i32_152 = arith.constant 0 : i32
    %410 = vector.broadcast %c0_i32_152 : i32 to vector<1x256xi32>
    %411 = arith.cmpi sge, %409, %410 : vector<1x256xi32>
    %c-2_i32_153 = arith.constant -2 : i32
    %412 = vector.broadcast %c-2_i32_153 : i32 to vector<1x256xi32>
    %413 = arith.addi %16, %412 : vector<1x256xi32>
    %c16_i32_154 = arith.constant 16 : i32
    %414 = vector.broadcast %c16_i32_154 : i32 to vector<1x256xi32>
    %415 = arith.cmpi slt, %413, %414 : vector<1x256xi32>
    %416 = arith.andi %411, %415 : vector<1x256xi1>
    %cst_155 = arith.constant 0.000000e+00 : f32
    %417 = vector.broadcast %cst_155 : f32 to vector<4x256xf32>
    %418 = vector.shape_cast %416 : vector<1x256xi1> to vector<1x256xi1>
    %419 = vector.broadcast %418 : vector<1x256xi1> to vector<4x256xi1>
    %420 = arith.select %419, %407, %417 : vector<4x256xi1>, vector<4x256xf32>
    %421 = vector.extract_strided_slice %28 {offsets = [0, 31], sizes = [4, 225], strides = [1, 1]} : vector<4x256xf32> to vector<4x225xf32>
    %cst_156 = arith.constant 0.000000e+00 : f32
    %422 = vector.broadcast %cst_156 : f32 to vector<4x31xf32>
    %423 = tpu.concatenate %421, %422 in 1 : vector<4x225xf32>, vector<4x31xf32> -> vector<4x256xf32>
    %c-1_i32_157 = arith.constant -1 : i32
    %424 = vector.broadcast %c-1_i32_157 : i32 to vector<1x256xi32>
    %425 = arith.addi %16, %424 : vector<1x256xi32>
    %c0_i32_158 = arith.constant 0 : i32
    %426 = vector.broadcast %c0_i32_158 : i32 to vector<1x256xi32>
    %427 = arith.cmpi sge, %425, %426 : vector<1x256xi32>
    %c-1_i32_159 = arith.constant -1 : i32
    %428 = vector.broadcast %c-1_i32_159 : i32 to vector<1x256xi32>
    %429 = arith.addi %16, %428 : vector<1x256xi32>
    %c16_i32_160 = arith.constant 16 : i32
    %430 = vector.broadcast %c16_i32_160 : i32 to vector<1x256xi32>
    %431 = arith.cmpi slt, %429, %430 : vector<1x256xi32>
    %432 = arith.andi %427, %431 : vector<1x256xi1>
    %cst_161 = arith.constant 0.000000e+00 : f32
    %433 = vector.broadcast %cst_161 : f32 to vector<4x256xf32>
    %434 = vector.shape_cast %432 : vector<1x256xi1> to vector<1x256xi1>
    %435 = vector.broadcast %434 : vector<1x256xi1> to vector<4x256xi1>
    %436 = arith.select %435, %423, %433 : vector<4x256xi1>, vector<4x256xf32>
    %437 = vector.extract_strided_slice %28 {offsets = [0, 32], sizes = [4, 224], strides = [1, 1]} : vector<4x256xf32> to vector<4x224xf32>
    %cst_162 = arith.constant 0.000000e+00 : f32
    %438 = vector.broadcast %cst_162 : f32 to vector<4x32xf32>
    %439 = tpu.concatenate %437, %438 in 1 : vector<4x224xf32>, vector<4x32xf32> -> vector<4x256xf32>
    %440 = vector.extract_strided_slice %28 {offsets = [0, 33], sizes = [4, 223], strides = [1, 1]} : vector<4x256xf32> to vector<4x223xf32>
    %cst_163 = arith.constant 0.000000e+00 : f32
    %441 = vector.broadcast %cst_163 : f32 to vector<4x33xf32>
    %442 = tpu.concatenate %440, %441 in 1 : vector<4x223xf32>, vector<4x33xf32> -> vector<4x256xf32>
    %c1_i32_164 = arith.constant 1 : i32
    %443 = vector.broadcast %c1_i32_164 : i32 to vector<1x256xi32>
    %444 = arith.addi %16, %443 : vector<1x256xi32>
    %c0_i32_165 = arith.constant 0 : i32
    %445 = vector.broadcast %c0_i32_165 : i32 to vector<1x256xi32>
    %446 = arith.cmpi sge, %444, %445 : vector<1x256xi32>
    %c1_i32_166 = arith.constant 1 : i32
    %447 = vector.broadcast %c1_i32_166 : i32 to vector<1x256xi32>
    %448 = arith.addi %16, %447 : vector<1x256xi32>
    %c16_i32_167 = arith.constant 16 : i32
    %449 = vector.broadcast %c16_i32_167 : i32 to vector<1x256xi32>
    %450 = arith.cmpi slt, %448, %449 : vector<1x256xi32>
    %451 = arith.andi %446, %450 : vector<1x256xi1>
    %cst_168 = arith.constant 0.000000e+00 : f32
    %452 = vector.broadcast %cst_168 : f32 to vector<4x256xf32>
    %453 = vector.shape_cast %451 : vector<1x256xi1> to vector<1x256xi1>
    %454 = vector.broadcast %453 : vector<1x256xi1> to vector<4x256xi1>
    %455 = arith.select %454, %442, %452 : vector<4x256xi1>, vector<4x256xf32>
    %456 = vector.extract_strided_slice %28 {offsets = [0, 34], sizes = [4, 222], strides = [1, 1]} : vector<4x256xf32> to vector<4x222xf32>
    %cst_169 = arith.constant 0.000000e+00 : f32
    %457 = vector.broadcast %cst_169 : f32 to vector<4x34xf32>
    %458 = tpu.concatenate %456, %457 in 1 : vector<4x222xf32>, vector<4x34xf32> -> vector<4x256xf32>
    %c2_i32_170 = arith.constant 2 : i32
    %459 = vector.broadcast %c2_i32_170 : i32 to vector<1x256xi32>
    %460 = arith.addi %16, %459 : vector<1x256xi32>
    %c0_i32_171 = arith.constant 0 : i32
    %461 = vector.broadcast %c0_i32_171 : i32 to vector<1x256xi32>
    %462 = arith.cmpi sge, %460, %461 : vector<1x256xi32>
    %c2_i32_172 = arith.constant 2 : i32
    %463 = vector.broadcast %c2_i32_172 : i32 to vector<1x256xi32>
    %464 = arith.addi %16, %463 : vector<1x256xi32>
    %c16_i32_173 = arith.constant 16 : i32
    %465 = vector.broadcast %c16_i32_173 : i32 to vector<1x256xi32>
    %466 = arith.cmpi slt, %464, %465 : vector<1x256xi32>
    %467 = arith.andi %462, %466 : vector<1x256xi1>
    %cst_174 = arith.constant 0.000000e+00 : f32
    %468 = vector.broadcast %cst_174 : f32 to vector<4x256xf32>
    %469 = vector.shape_cast %467 : vector<1x256xi1> to vector<1x256xi1>
    %470 = vector.broadcast %469 : vector<1x256xi1> to vector<4x256xi1>
    %471 = arith.select %470, %458, %468 : vector<4x256xi1>, vector<4x256xf32>
    %472 = tpu.concatenate %155, %171, %174, %190, %206, %222, %238, %241, %257, %273, %289, %305, %28, %321, %337, %353 in 0 : vector<4x256xf32>, vector<4x256xf32>, vector<4x256xf32>, vector<4x256xf32>, vector<4x256xf32>, vector<4x256xf32>, vector<4x256xf32>, vector<4x256xf32>, vector<4x256xf32>, vector<4x256xf32>, vector<4x256xf32>, vector<4x256xf32>, vector<4x256xf32>, vector<4x256xf32>, vector<4x256xf32>, vector<4x256xf32> -> vector<64x256xf32>
    %473 = tpu.concatenate %369, %372, %388, %404, %420, %436, %439, %455, %471 in 0 : vector<4x256xf32>, vector<4x256xf32>, vector<4x256xf32>, vector<4x256xf32>, vector<4x256xf32>, vector<4x256xf32>, vector<4x256xf32>, vector<4x256xf32>, vector<4x256xf32> -> vector<36x256xf32>
    %474 = tpu.concatenate %472, %473 in 0 : vector<64x256xf32>, vector<36x256xf32> -> vector<100x256xf32>
    %c0_175 = arith.constant 0 : index
    %c0_176 = arith.constant 0 : index
    %475 = vector.load %arg6[%c0_175, %c0_176] : memref<8x100xbf16, #tpu.memory_space<vmem>>, vector<8x100xbf16>
    %476 = arith.truncf %474 : vector<100x256xf32> to vector<100x256xbf16>
    %cst_177 = arith.constant dense<0.000000e+00> : vector<8x256xf32>
    %477 = tpu.matmul %475, %476, %cst_177 {dimension_numbers = #tpu.dot_dimension_numbers<[1], [0], [0], [1], [0, 0, 1, 1], [], []>} : vector<8x100xbf16>, vector<100x256xbf16>, vector<8x256xf32> -> vector<8x256xf32>
    %c0_178 = arith.constant 0 : index
    %c0_179 = arith.constant 0 : index
    %478 = vector.load %arg7[%c0_178, %c0_179] : memref<8x1xf32, #tpu.memory_space<vmem>>, vector<8x1xf32>
    %479 = vector.broadcast %478 : vector<8x1xf32> to vector<8x256xf32>
    %480 = arith.addf %477, %479 : vector<8x256xf32>
    %cst_180 = arith.constant 0.000000e+00 : f32
    %481 = vector.broadcast %cst_180 : f32 to vector<8x256xf32>
    %482 = arith.maximumf %480, %481 : vector<8x256xf32>
    %483 = arith.extf %18 : vector<4x256xbf16> to vector<4x256xf32>
    %cst_181 = arith.constant 0xFF800000 : f32
    %484 = vector.broadcast %cst_181 : f32 to vector<4x17xf32>
    %485 = vector.extract_strided_slice %483 {offsets = [0, 0], sizes = [4, 239], strides = [1, 1]} : vector<4x256xf32> to vector<4x239xf32>
    %486 = tpu.concatenate %484, %485 in 1 : vector<4x17xf32>, vector<4x239xf32> -> vector<4x256xf32>
    %c-1_i32_182 = arith.constant -1 : i32
    %487 = vector.broadcast %c-1_i32_182 : i32 to vector<1x256xi32>
    %488 = arith.addi %16, %487 : vector<1x256xi32>
    %c0_i32_183 = arith.constant 0 : i32
    %489 = vector.broadcast %c0_i32_183 : i32 to vector<1x256xi32>
    %490 = arith.cmpi sge, %488, %489 : vector<1x256xi32>
    %c-1_i32_184 = arith.constant -1 : i32
    %491 = vector.broadcast %c-1_i32_184 : i32 to vector<1x256xi32>
    %492 = arith.addi %16, %491 : vector<1x256xi32>
    %c16_i32_185 = arith.constant 16 : i32
    %493 = vector.broadcast %c16_i32_185 : i32 to vector<1x256xi32>
    %494 = arith.cmpi slt, %492, %493 : vector<1x256xi32>
    %495 = arith.andi %490, %494 : vector<1x256xi1>
    %cst_186 = arith.constant 0xFF800000 : f32
    %496 = vector.broadcast %cst_186 : f32 to vector<4x256xf32>
    %497 = vector.shape_cast %495 : vector<1x256xi1> to vector<1x256xi1>
    %498 = vector.broadcast %497 : vector<1x256xi1> to vector<4x256xi1>
    %499 = arith.select %498, %486, %496 : vector<4x256xi1>, vector<4x256xf32>
    %cst_187 = arith.constant 0xFF800000 : f32
    %500 = vector.broadcast %cst_187 : f32 to vector<4x16xf32>
    %501 = vector.extract_strided_slice %483 {offsets = [0, 0], sizes = [4, 240], strides = [1, 1]} : vector<4x256xf32> to vector<4x240xf32>
    %502 = tpu.concatenate %500, %501 in 1 : vector<4x16xf32>, vector<4x240xf32> -> vector<4x256xf32>
    %cst_188 = arith.constant 0xFF800000 : f32
    %503 = vector.broadcast %cst_188 : f32 to vector<4x15xf32>
    %504 = vector.extract_strided_slice %483 {offsets = [0, 0], sizes = [4, 241], strides = [1, 1]} : vector<4x256xf32> to vector<4x241xf32>
    %505 = tpu.concatenate %503, %504 in 1 : vector<4x15xf32>, vector<4x241xf32> -> vector<4x256xf32>
    %c1_i32_189 = arith.constant 1 : i32
    %506 = vector.broadcast %c1_i32_189 : i32 to vector<1x256xi32>
    %507 = arith.addi %16, %506 : vector<1x256xi32>
    %c0_i32_190 = arith.constant 0 : i32
    %508 = vector.broadcast %c0_i32_190 : i32 to vector<1x256xi32>
    %509 = arith.cmpi sge, %507, %508 : vector<1x256xi32>
    %c1_i32_191 = arith.constant 1 : i32
    %510 = vector.broadcast %c1_i32_191 : i32 to vector<1x256xi32>
    %511 = arith.addi %16, %510 : vector<1x256xi32>
    %c16_i32_192 = arith.constant 16 : i32
    %512 = vector.broadcast %c16_i32_192 : i32 to vector<1x256xi32>
    %513 = arith.cmpi slt, %511, %512 : vector<1x256xi32>
    %514 = arith.andi %509, %513 : vector<1x256xi1>
    %cst_193 = arith.constant 0xFF800000 : f32
    %515 = vector.broadcast %cst_193 : f32 to vector<4x256xf32>
    %516 = vector.shape_cast %514 : vector<1x256xi1> to vector<1x256xi1>
    %517 = vector.broadcast %516 : vector<1x256xi1> to vector<4x256xi1>
    %518 = arith.select %517, %505, %515 : vector<4x256xi1>, vector<4x256xf32>
    %cst_194 = arith.constant 0xFF800000 : f32
    %519 = vector.broadcast %cst_194 : f32 to vector<4x1xf32>
    %520 = vector.extract_strided_slice %483 {offsets = [0, 0], sizes = [4, 255], strides = [1, 1]} : vector<4x256xf32> to vector<4x255xf32>
    %521 = tpu.concatenate %519, %520 in 1 : vector<4x1xf32>, vector<4x255xf32> -> vector<4x256xf32>
    %c-1_i32_195 = arith.constant -1 : i32
    %522 = vector.broadcast %c-1_i32_195 : i32 to vector<1x256xi32>
    %523 = arith.addi %16, %522 : vector<1x256xi32>
    %c0_i32_196 = arith.constant 0 : i32
    %524 = vector.broadcast %c0_i32_196 : i32 to vector<1x256xi32>
    %525 = arith.cmpi sge, %523, %524 : vector<1x256xi32>
    %c-1_i32_197 = arith.constant -1 : i32
    %526 = vector.broadcast %c-1_i32_197 : i32 to vector<1x256xi32>
    %527 = arith.addi %16, %526 : vector<1x256xi32>
    %c16_i32_198 = arith.constant 16 : i32
    %528 = vector.broadcast %c16_i32_198 : i32 to vector<1x256xi32>
    %529 = arith.cmpi slt, %527, %528 : vector<1x256xi32>
    %530 = arith.andi %525, %529 : vector<1x256xi1>
    %cst_199 = arith.constant 0xFF800000 : f32
    %531 = vector.broadcast %cst_199 : f32 to vector<4x256xf32>
    %532 = vector.shape_cast %530 : vector<1x256xi1> to vector<1x256xi1>
    %533 = vector.broadcast %532 : vector<1x256xi1> to vector<4x256xi1>
    %534 = arith.select %533, %521, %531 : vector<4x256xi1>, vector<4x256xf32>
    %535 = vector.extract_strided_slice %483 {offsets = [0, 1], sizes = [4, 255], strides = [1, 1]} : vector<4x256xf32> to vector<4x255xf32>
    %cst_200 = arith.constant 0xFF800000 : f32
    %536 = vector.broadcast %cst_200 : f32 to vector<4x1xf32>
    %537 = tpu.concatenate %535, %536 in 1 : vector<4x255xf32>, vector<4x1xf32> -> vector<4x256xf32>
    %c1_i32_201 = arith.constant 1 : i32
    %538 = vector.broadcast %c1_i32_201 : i32 to vector<1x256xi32>
    %539 = arith.addi %16, %538 : vector<1x256xi32>
    %c0_i32_202 = arith.constant 0 : i32
    %540 = vector.broadcast %c0_i32_202 : i32 to vector<1x256xi32>
    %541 = arith.cmpi sge, %539, %540 : vector<1x256xi32>
    %c1_i32_203 = arith.constant 1 : i32
    %542 = vector.broadcast %c1_i32_203 : i32 to vector<1x256xi32>
    %543 = arith.addi %16, %542 : vector<1x256xi32>
    %c16_i32_204 = arith.constant 16 : i32
    %544 = vector.broadcast %c16_i32_204 : i32 to vector<1x256xi32>
    %545 = arith.cmpi slt, %543, %544 : vector<1x256xi32>
    %546 = arith.andi %541, %545 : vector<1x256xi1>
    %cst_205 = arith.constant 0xFF800000 : f32
    %547 = vector.broadcast %cst_205 : f32 to vector<4x256xf32>
    %548 = vector.shape_cast %546 : vector<1x256xi1> to vector<1x256xi1>
    %549 = vector.broadcast %548 : vector<1x256xi1> to vector<4x256xi1>
    %550 = arith.select %549, %537, %547 : vector<4x256xi1>, vector<4x256xf32>
    %551 = vector.extract_strided_slice %483 {offsets = [0, 15], sizes = [4, 241], strides = [1, 1]} : vector<4x256xf32> to vector<4x241xf32>
    %cst_206 = arith.constant 0xFF800000 : f32
    %552 = vector.broadcast %cst_206 : f32 to vector<4x15xf32>
    %553 = tpu.concatenate %551, %552 in 1 : vector<4x241xf32>, vector<4x15xf32> -> vector<4x256xf32>
    %c-1_i32_207 = arith.constant -1 : i32
    %554 = vector.broadcast %c-1_i32_207 : i32 to vector<1x256xi32>
    %555 = arith.addi %16, %554 : vector<1x256xi32>
    %c0_i32_208 = arith.constant 0 : i32
    %556 = vector.broadcast %c0_i32_208 : i32 to vector<1x256xi32>
    %557 = arith.cmpi sge, %555, %556 : vector<1x256xi32>
    %c-1_i32_209 = arith.constant -1 : i32
    %558 = vector.broadcast %c-1_i32_209 : i32 to vector<1x256xi32>
    %559 = arith.addi %16, %558 : vector<1x256xi32>
    %c16_i32_210 = arith.constant 16 : i32
    %560 = vector.broadcast %c16_i32_210 : i32 to vector<1x256xi32>
    %561 = arith.cmpi slt, %559, %560 : vector<1x256xi32>
    %562 = arith.andi %557, %561 : vector<1x256xi1>
    %cst_211 = arith.constant 0xFF800000 : f32
    %563 = vector.broadcast %cst_211 : f32 to vector<4x256xf32>
    %564 = vector.shape_cast %562 : vector<1x256xi1> to vector<1x256xi1>
    %565 = vector.broadcast %564 : vector<1x256xi1> to vector<4x256xi1>
    %566 = arith.select %565, %553, %563 : vector<4x256xi1>, vector<4x256xf32>
    %567 = vector.extract_strided_slice %483 {offsets = [0, 16], sizes = [4, 240], strides = [1, 1]} : vector<4x256xf32> to vector<4x240xf32>
    %cst_212 = arith.constant 0xFF800000 : f32
    %568 = vector.broadcast %cst_212 : f32 to vector<4x16xf32>
    %569 = tpu.concatenate %567, %568 in 1 : vector<4x240xf32>, vector<4x16xf32> -> vector<4x256xf32>
    %570 = vector.extract_strided_slice %483 {offsets = [0, 17], sizes = [4, 239], strides = [1, 1]} : vector<4x256xf32> to vector<4x239xf32>
    %cst_213 = arith.constant 0xFF800000 : f32
    %571 = vector.broadcast %cst_213 : f32 to vector<4x17xf32>
    %572 = tpu.concatenate %570, %571 in 1 : vector<4x239xf32>, vector<4x17xf32> -> vector<4x256xf32>
    %c1_i32_214 = arith.constant 1 : i32
    %573 = vector.broadcast %c1_i32_214 : i32 to vector<1x256xi32>
    %574 = arith.addi %16, %573 : vector<1x256xi32>
    %c0_i32_215 = arith.constant 0 : i32
    %575 = vector.broadcast %c0_i32_215 : i32 to vector<1x256xi32>
    %576 = arith.cmpi sge, %574, %575 : vector<1x256xi32>
    %c1_i32_216 = arith.constant 1 : i32
    %577 = vector.broadcast %c1_i32_216 : i32 to vector<1x256xi32>
    %578 = arith.addi %16, %577 : vector<1x256xi32>
    %c16_i32_217 = arith.constant 16 : i32
    %579 = vector.broadcast %c16_i32_217 : i32 to vector<1x256xi32>
    %580 = arith.cmpi slt, %578, %579 : vector<1x256xi32>
    %581 = arith.andi %576, %580 : vector<1x256xi1>
    %cst_218 = arith.constant 0xFF800000 : f32
    %582 = vector.broadcast %cst_218 : f32 to vector<4x256xf32>
    %583 = vector.shape_cast %581 : vector<1x256xi1> to vector<1x256xi1>
    %584 = vector.broadcast %583 : vector<1x256xi1> to vector<4x256xi1>
    %585 = arith.select %584, %572, %582 : vector<4x256xi1>, vector<4x256xf32>
    %586 = arith.maximumf %499, %502 : vector<4x256xf32>
    %587 = arith.maximumf %586, %518 : vector<4x256xf32>
    %588 = arith.maximumf %587, %534 : vector<4x256xf32>
    %589 = arith.maximumf %588, %483 : vector<4x256xf32>
    %590 = arith.maximumf %589, %550 : vector<4x256xf32>
    %591 = arith.maximumf %590, %566 : vector<4x256xf32>
    %592 = arith.maximumf %591, %569 : vector<4x256xf32>
    %593 = arith.maximumf %592, %585 : vector<4x256xf32>
    %c0_219 = arith.constant 0 : index
    %c0_220 = arith.constant 0 : index
    %594 = vector.load %arg8[%c0_219, %c0_220] : memref<8x4xbf16, #tpu.memory_space<vmem>>, vector<8x4xbf16>
    %595 = arith.truncf %593 : vector<4x256xf32> to vector<4x256xbf16>
    %cst_221 = arith.constant dense<0.000000e+00> : vector<8x256xf32>
    %596 = tpu.matmul %594, %595, %cst_221 {dimension_numbers = #tpu.dot_dimension_numbers<[1], [0], [0], [1], [0, 0, 1, 1], [], []>} : vector<8x4xbf16>, vector<4x256xbf16>, vector<8x256xf32> -> vector<8x256xf32>
    %c0_222 = arith.constant 0 : index
    %c0_223 = arith.constant 0 : index
    %597 = vector.load %arg9[%c0_222, %c0_223] : memref<8x1xf32, #tpu.memory_space<vmem>>, vector<8x1xf32>
    %598 = vector.broadcast %597 : vector<8x1xf32> to vector<8x256xf32>
    %599 = arith.addf %596, %598 : vector<8x256xf32>
    %cst_224 = arith.constant 0.000000e+00 : f32
    %600 = vector.broadcast %cst_224 : f32 to vector<8x256xf32>
    %601 = arith.maximumf %599, %600 : vector<8x256xf32>
    %c0_225 = arith.constant 0 : index
    %c0_226 = arith.constant 0 : index
    %c0_227 = arith.constant 0 : index
    %602 = vector.load %arg10[%c0_225, %c0_226, %c0_227] : memref<1x32x256xf32, #tpu.memory_space<vmem>>, vector<1x8x256xf32>
    %603 = vector.shape_cast %602 : vector<1x8x256xf32> to vector<8x256xf32>
    %604 = vector.shape_cast %26 : vector<8x256xf32> to vector<1x8x256xf32>
    tpu.vector_store %arg10[%c0_225, %c0_226, %c0_227], %604 {strides = array<i32>} : memref<1x32x256xf32, #tpu.memory_space<vmem>>, vector<1x8x256xf32>,
    %c0_228 = arith.constant 0 : index
    %c8 = arith.constant 8 : index
    %c0_229 = arith.constant 0 : index
    %605 = vector.load %arg10[%c0_228, %c8, %c0_229] : memref<1x32x256xf32, #tpu.memory_space<vmem>>, vector<1x8x256xf32>
    %606 = vector.shape_cast %605 : vector<1x8x256xf32> to vector<8x256xf32>
    %607 = vector.shape_cast %139 : vector<8x256xf32> to vector<1x8x256xf32>
    tpu.vector_store %arg10[%c0_228, %c8, %c0_229], %607 {strides = array<i32>} : memref<1x32x256xf32, #tpu.memory_space<vmem>>, vector<1x8x256xf32>,
    %c0_230 = arith.constant 0 : index
    %c16 = arith.constant 16 : index
    %c0_231 = arith.constant 0 : index
    %608 = vector.load %arg10[%c0_230, %c16, %c0_231] : memref<1x32x256xf32, #tpu.memory_space<vmem>>, vector<1x8x256xf32>
    %609 = vector.shape_cast %608 : vector<1x8x256xf32> to vector<8x256xf32>
    %610 = vector.shape_cast %482 : vector<8x256xf32> to vector<1x8x256xf32>
    tpu.vector_store %arg10[%c0_230, %c16, %c0_231], %610 {strides = array<i32>} : memref<1x32x256xf32, #tpu.memory_space<vmem>>, vector<1x8x256xf32>,
    %c0_232 = arith.constant 0 : index
    %c24 = arith.constant 24 : index
    %c0_233 = arith.constant 0 : index
    %611 = vector.load %arg10[%c0_232, %c24, %c0_233] : memref<1x32x256xf32, #tpu.memory_space<vmem>>, vector<1x8x256xf32>
    %612 = vector.shape_cast %611 : vector<1x8x256xf32> to vector<8x256xf32>
    %613 = vector.shape_cast %601 : vector<8x256xf32> to vector<1x8x256xf32>
    tpu.vector_store %arg10[%c0_232, %c24, %c0_233], %613 {strides = array<i32>} : memref<1x32x256xf32, #tpu.memory_space<vmem>>, vector<1x8x256xf32>,
    return
  }
  func.func @transform_0(%arg0: i32) -> (i32, i32, i32) {
    %c0_i32 = arith.constant 0 : i32
    %c0_i32_0 = arith.constant 0 : i32
    %c0_i32_1 = arith.constant 0 : i32
    return %arg0, %c0_i32, %c0_i32_0 : i32, i32, i32
  }
  func.func @transform_1(%arg0: i32) -> (i32, i32) {
    %c0_i32 = arith.constant 0 : i32
    %c0_i32_0 = arith.constant 0 : i32
    %c0_i32_1 = arith.constant 0 : i32
    return %c0_i32, %c0_i32_0 : i32, i32
  }
  func.func @transform_2(%arg0: i32) -> (i32, i32) {
    %c0_i32 = arith.constant 0 : i32
    %c0_i32_0 = arith.constant 0 : i32
    %c0_i32_1 = arith.constant 0 : i32
    return %c0_i32, %c0_i32_0 : i32, i32
  }
  func.func @transform_3(%arg0: i32) -> (i32, i32) {
    %c0_i32 = arith.constant 0 : i32
    %c0_i32_0 = arith.constant 0 : i32
    %c0_i32_1 = arith.constant 0 : i32
    return %c0_i32, %c0_i32_0 : i32, i32
  }
  func.func @transform_4(%arg0: i32) -> (i32, i32) {
    %c0_i32 = arith.constant 0 : i32
    %c0_i32_0 = arith.constant 0 : i32
    %c0_i32_1 = arith.constant 0 : i32
    return %c0_i32, %c0_i32_0 : i32, i32
  }
  func.func @transform_5(%arg0: i32) -> (i32, i32) {
    %c0_i32 = arith.constant 0 : i32
    %c0_i32_0 = arith.constant 0 : i32
    %c0_i32_1 = arith.constant 0 : i32
    return %c0_i32, %c0_i32_0 : i32, i32
  }
  func.func @transform_6(%arg0: i32) -> (i32, i32) {
    %c0_i32 = arith.constant 0 : i32
    %c0_i32_0 = arith.constant 0 : i32
    %c0_i32_1 = arith.constant 0 : i32
    return %c0_i32, %c0_i32_0 : i32, i32
  }
  func.func @transform_7(%arg0: i32) -> (i32, i32) {
    %c0_i32 = arith.constant 0 : i32
    %c0_i32_0 = arith.constant 0 : i32
    %c0_i32_1 = arith.constant 0 : i32
    return %c0_i32, %c0_i32_0 : i32, i32
  }
  func.func @transform_8(%arg0: i32) -> (i32, i32) {
    %c0_i32 = arith.constant 0 : i32
    %c0_i32_0 = arith.constant 0 : i32
    %c0_i32_1 = arith.constant 0 : i32
    return %c0_i32, %c0_i32_0 : i32, i32
  }
  func.func @transform_9(%arg0: i32) -> (i32, i32, i32) {
    %c0_i32 = arith.constant 0 : i32
    %c0_i32_0 = arith.constant 0 : i32
    %c0_i32_1 = arith.constant 0 : i32
    return %arg0, %c0_i32, %c0_i32_0 : i32, i32, i32
  }
}

</mosaic_0001>

<llo_original>
// kernel: inception_forward.1
$region0: #{inception_forward.1}
  #allocation0 [shape = 'u32[]', space=smem, size = 0x4, offset = 0x4, fixed_abs, tag = 'smem constant byte address 0x4 - core index']
  #allocation1 [shape = 'u32[144,128]{1,0:T(1,128)}', space=vmem, size = 0x12000, scoped, tag = 'internal scratch']
  %s0 = inlined_call_operand.vmem [shape: bf16[2,4,256], index: 0, kind: input, shape index: {}]
  %s1 = inlined_call_operand.vmem [shape: bf16[16,4], index: 1, kind: input, shape index: {}]
  %s2 = inlined_call_operand.vmem [shape: f32[16,1], index: 2, kind: input, shape index: {}]
  %s3 = inlined_call_operand.vmem [shape: bf16[8,36], index: 3, kind: input, shape index: {}]
  %s4 = inlined_call_operand.vmem [shape: f32[8,1], index: 4, kind: input, shape index: {}]
  %s5 = inlined_call_operand.vmem [shape: bf16[8,100], index: 5, kind: input, shape index: {}]
  %s6 = inlined_call_operand.vmem [shape: f32[8,1], index: 6, kind: input, shape index: {}]
  %s7 = inlined_call_operand.vmem [shape: bf16[8,4], index: 7, kind: input, shape index: {}]
  %s8 = inlined_call_operand.vmem [shape: f32[8,1], index: 8, kind: input, shape index: {}]
  %s9 = inlined_call_operand.vmem [shape: f32[2,32,256], index: 9, kind: output, shape index: {}]
  %s10 = sld [smem:[#allocation0]]
  $region69: #{inception_forward.1} parent=0
    _
  %s12 = ssub.s32 1, %s10
  %s13 = scalar_select 0, %s12, %s10
  loop: start=0, step=1, limit=4
  $region2: #{inception_forward.1} parent=0 // loop_pre_header
    _
  $region3: #{inception_forward.1} parent=0 // loop_header
    %s15 = sphi 0, %s19
    %p16 = scmp.ge.s32.totalorder %s15, 4
    %s25 = sphi 0, %s27
    %s28 = sphi 0, %s25
    %s29 = sphi 0, %s28
    %s45 = sphi 0, %s29
    %s49 = sphi 0, %s49
    %s51 = sphi 0, %s49
    %s52 = sphi 0, %s51
    %s66 = sphi 0, %s52
    %s70 = sphi 0, %s70
    %s72 = sphi 0, %s70
    %s73 = sphi 0, %s72
    %s87 = sphi 0, %s73
    %s91 = sphi 0, %s91
    %s93 = sphi 0, %s91
    %s94 = sphi 0, %s93
    %s108 = sphi 0, %s94
    %s112 = sphi 0, %s112
    %s114 = sphi 0, %s112
    %s115 = sphi 0, %s114
    %s129 = sphi 0, %s115
    %s133 = sphi 0, %s133
    %s135 = sphi 0, %s133
    %s136 = sphi 0, %s135
    %s150 = sphi 0, %s136
    %s154 = sphi 0, %s154
    %s156 = sphi 0, %s154
    %s157 = sphi 0, %s156
    %s171 = sphi 0, %s157
    %s175 = sphi 0, %s175
    %s177 = sphi 0, %s175
    %s178 = sphi 0, %s177
    %s192 = sphi 0, %s178
    %s196 = sphi 0, %s196
    %s198 = sphi 0, %s196
    %s199 = sphi 0, %s198
    %s213 = sphi 0, %s199
    %s219 = sphi 0, %s221
    %s222 = sphi 0, %s219
    %s223 = sphi 0, %s222
    %s239 = sphi 0, %s223
  $region4: #{inception_forward.1} parent=0 // loop_header_branch
    %18 = sbr.rel (%p16) target = $region8
  $region5: #{inception_forward.1} parent=0 // loop_body
    %s20 = ssub.s32 %s15, 1
    %s21 = ssub.s32 %s15, 2
    %s22 = sadd.s32 %s15, 1
    %s23 = ssub.s32 %s15, %s22
    %p24 = scmp.eq.s32.totalorder %s23, 0
    %s26 = sadd.s32 %s25, 1
    %s27 = scalar_select %p24, %s25, %s26
    %p30 = pneg %p24
    %p31 = scmp.eq.s32.totalorder %s15, 1
    %p32 = por %p30, %p31
    %p33 = scmp.ne.s32.totalorder %s25, %s28
    %p34 = scmp.eq.s32.totalorder %s15, 0
    %p35 = por %p33, %p34
    %p36 = scmp.ne.s32.totalorder %s25, %s28
    %p37 = scmp.eq.s32.totalorder %s20, 1
    %p38 = por %p36, %p37
    %p39 = scmp.ne.s32.totalorder %s28, %s29
    %p40 = scmp.eq.s32.totalorder %s20, 0
    %p41 = por %p39, %p40
    %p42 = scmp.ne.s32.totalorder %s28, %s29
    %p43 = scmp.eq.s32.totalorder %s21, 1
    %p44 = por %p42, %p43
    %p46 = scmp.ne.s32.totalorder %s29, %s45
    %p47 = scmp.eq.s32.totalorder %s21, 0
    %p48 = por %p46, %p47
    %s50 = sadd.s32 %s49, 1
    %p53 = scmp.eq.s32.totalorder %s15, 1
    %p54 = scmp.ne.s32.totalorder %s49, %s51
    %p55 = scmp.eq.s32.totalorder %s15, 0
    %p56 = por %p54, %p55
    %p57 = scmp.ne.s32.totalorder %s49, %s51
    %p58 = scmp.eq.s32.totalorder %s20, 1
    %p59 = por %p57, %p58
    %p60 = scmp.ne.s32.totalorder %s51, %s52
    %p61 = scmp.eq.s32.totalorder %s20, 0
    %p62 = por %p60, %p61
    %p63 = scmp.ne.s32.totalorder %s51, %s52
    %p64 = scmp.eq.s32.totalorder %s21, 1
    %p65 = por %p63, %p64
    %p67 = scmp.ne.s32.totalorder %s52, %s66
    %p68 = scmp.eq.s32.totalorder %s21, 0
    %p69 = por %p67, %p68
    %s71 = sadd.s32 %s70, 1
    %p74 = scmp.eq.s32.totalorder %s15, 1
    %p75 = scmp.ne.s32.totalorder %s70, %s72
    %p76 = scmp.eq.s32.totalorder %s15, 0
    %p77 = por %p75, %p76
    %p78 = scmp.ne.s32.totalorder %s70, %s72
    %p79 = scmp.eq.s32.totalorder %s20, 1
    %p80 = por %p78, %p79
    %p81 = scmp.ne.s32.totalorder %s72, %s73
    %p82 = scmp.eq.s32.totalorder %s20, 0
    %p83 = por %p81, %p82
    %p84 = scmp.ne.s32.totalorder %s72, %s73
    %p85 = scmp.eq.s32.totalorder %s21, 1
    %p86 = por %p84, %p85
    %p88 = scmp.ne.s32.totalorder %s73, %s87
    %p89 = scmp.eq.s32.totalorder %s21, 0
    %p90 = por %p88, %p89
    %s92 = sadd.s32 %s91, 1
    %p95 = scmp.eq.s32.totalorder %s15, 1
    %p96 = scmp.ne.s32.totalorder %s91, %s93
    %p97 = scmp.eq.s32.totalorder %s15, 0
    %p98 = por %p96, %p97
    %p99 = scmp.ne.s32.totalorder %s91, %s93
    %p100 = scmp.eq.s32.totalorder %s20, 1
    %p101 = por %p99, %p100
    %p102 = scmp.ne.s32.totalorder %s93, %s94
    %p103 = scmp.eq.s32.totalorder %s20, 0
    %p104 = por %p102, %p103
    %p105 = scmp.ne.s32.totalorder %s93, %s94
    %p106 = scmp.eq.s32.totalorder %s21, 1
    %p107 = por %p105, %p106
    %p109 = scmp.ne.s32.totalorder %s94, %s108
    %p110 = scmp.eq.s32.totalorder %s21, 0
    %p111 = por %p109, %p110
    %s113 = sadd.s32 %s112, 1
    %p116 = scmp.eq.s32.totalorder %s15, 1
    %p117 = scmp.ne.s32.totalorder %s112, %s114
    %p118 = scmp.eq.s32.totalorder %s15, 0
    %p119 = por %p117, %p118
    %p120 = scmp.ne.s32.totalorder %s112, %s114
    %p121 = scmp.eq.s32.totalorder %s20, 1
    %p122 = por %p120, %p121
    %p123 = scmp.ne.s32.totalorder %s114, %s115
    %p124 = scmp.eq.s32.totalorder %s20, 0
    %p125 = por %p123, %p124
    %p126 = scmp.ne.s32.totalorder %s114, %s115
    %p127 = scmp.eq.s32.totalorder %s21, 1
    %p128 = por %p126, %p127
    %p130 = scmp.ne.s32.totalorder %s115, %s129
    %p131 = scmp.eq.s32.totalorder %s21, 0
    %p132 = por %p130, %p131
    %s134 = sadd.s32 %s133, 1
    %p137 = scmp.eq.s32.totalorder %s15, 1
    %p138 = scmp.ne.s32.totalorder %s133, %s135
    %p139 = scmp.eq.s32.totalorder %s15, 0
    %p140 = por %p138, %p139
    %p141 = scmp.ne.s32.totalorder %s133, %s135
    %p142 = scmp.eq.s32.totalorder %s20, 1
    %p143 = por %p141, %p142
    %p144 = scmp.ne.s32.totalorder %s135, %s136
    %p145 = scmp.eq.s32.totalorder %s20, 0
    %p146 = por %p144, %p145
    %p147 = scmp.ne.s32.totalorder %s135, %s136
    %p148 = scmp.eq.s32.totalorder %s21, 1
    %p149 = por %p147, %p148
    %p151 = scmp.ne.s32.totalorder %s136, %s150
    %p152 = scmp.eq.s32.totalorder %s21, 0
    %p153 = por %p151, %p152
    %s155 = sadd.s32 %s154, 1
    %p158 = scmp.eq.s32.totalorder %s15, 1
    %p159 = scmp.ne.s32.totalorder %s154, %s156
    %p160 = scmp.eq.s32.totalorder %s15, 0
    %p161 = por %p159, %p160
    %p162 = scmp.ne.s32.totalorder %s154, %s156
    %p163 = scmp.eq.s32.totalorder %s20, 1
    %p164 = por %p162, %p163
    %p165 = scmp.ne.s32.totalorder %s156, %s157
    %p166 = scmp.eq.s32.totalorder %s20, 0
    %p167 = por %p165, %p166
    %p168 = scmp.ne.s32.totalorder %s156, %s157
    %p169 = scmp.eq.s32.totalorder %s21, 1
    %p170 = por %p168, %p169
    %p172 = scmp.ne.s32.totalorder %s157, %s171
    %p173 = scmp.eq.s32.totalorder %s21, 0
    %p174 = por %p172, %p173
    %s176 = sadd.s32 %s175, 1
    %p179 = scmp.eq.s32.totalorder %s15, 1
    %p180 = scmp.ne.s32.totalorder %s175, %s177
    %p181 = scmp.eq.s32.totalorder %s15, 0
    %p182 = por %p180, %p181
    %p183 = scmp.ne.s32.totalorder %s175, %s177
    %p184 = scmp.eq.s32.totalorder %s20, 1
    %p185 = por %p183, %p184
    %p186 = scmp.ne.s32.totalorder %s177, %s178
    %p187 = scmp.eq.s32.totalorder %s20, 0
    %p188 = por %p186, %p187
    %p189 = scmp.ne.s32.totalorder %s177, %s178
    %p190 = scmp.eq.s32.totalorder %s21, 1
    %p191 = por %p189, %p190
    %p193 = scmp.ne.s32.totalorder %s178, %s192
    %p194 = scmp.eq.s32.totalorder %s21, 0
    %p195 = por %p193, %p194
    %s197 = sadd.s32 %s196, 1
    %p200 = scmp.eq.s32.totalorder %s15, 1
    %p201 = scmp.ne.s32.totalorder %s196, %s198
    %p202 = scmp.eq.s32.totalorder %s15, 0
    %p203 = por %p201, %p202
    %p204 = scmp.ne.s32.totalorder %s196, %s198
    %p205 = scmp.eq.s32.totalorder %s20, 1
    %p206 = por %p204, %p205
    %p207 = scmp.ne.s32.totalorder %s198, %s199
    %p208 = scmp.eq.s32.totalorder %s20, 0
    %p209 = por %p207, %p208
    %p210 = scmp.ne.s32.totalorder %s198, %s199
    %p211 = scmp.eq.s32.totalorder %s21, 1
    %p212 = por %p210, %p211
    %p214 = scmp.ne.s32.totalorder %s199, %s213
    %p215 = scmp.eq.s32.totalorder %s21, 0
    %p216 = por %p214, %p215
    %s217 = ssub.s32 %s15, %s22
    %p218 = scmp.eq.s32.totalorder %s217, 0
    %s220 = sadd.s32 %s219, 1
    %s221 = scalar_select %p218, %s219, %s220
    %p224 = pneg %p218
    %p225 = scmp.eq.s32.totalorder %s15, 1
    %p226 = por %p224, %p225
    %p227 = scmp.ne.s32.totalorder %s219, %s222
    %p228 = scmp.eq.s32.totalorder %s15, 0
    %p229 = por %p227, %p228
    %p230 = scmp.ne.s32.totalorder %s219, %s222
    %p231 = scmp.eq.s32.totalorder %s20, 1
    %p232 = por %p230, %p231
    %p233 = scmp.ne.s32.totalorder %s222, %s223
    %p234 = scmp.eq.s32.totalorder %s20, 0
    %p235 = por %p233, %p234
    %p236 = scmp.ne.s32.totalorder %s222, %s223
    %p237 = scmp.eq.s32.totalorder %s21, 1
    %p238 = por %p236, %p237
    %p240 = scmp.ne.s32.totalorder %s223, %s239
    %p241 = scmp.eq.s32.totalorder %s21, 0
    %p242 = por %p240, %p241
    %p243 = scmp.le.s32.totalorder 1, %s15
    %p244 = scmp.lt.s32.totalorder %s15, 3
    %p245 = pnand %p243, %p244
    %p246 = pneg %p245
    // Predicated region
    $region9: #{inception_forward.1} parent=5 // pred_check
      _
    $region10: #{inception_forward.1} parent=5 // pred_check_branch
      %248 = sbr.rel (%p245) target = $region12
    $region11: #{inception_forward.1} parent=5 // pred_region
      %s249 = ssub.s32 %s15, 1
      // Predicated region
      $region13: #{inception_forward.1} parent=11 // pred_check
        %p250 = pneg %p62
      $region14: #{inception_forward.1} parent=11 // pred_check_branch
        %252 = sbr.rel (%p250) target = $region16
      $region15: #{inception_forward.1} parent=11 // pred_region
        _
      $region16: #{inception_forward.1} parent=11 // pred_fallthru
        _
      // Predicated region
      $region17: #{inception_forward.1} parent=11 // pred_check
        %p253 = pneg %p83
      $region18: #{inception_forward.1} parent=11 // pred_check_branch
        %255 = sbr.rel (%p253) target = $region20
      $region19: #{inception_forward.1} parent=11 // pred_region
        _
      $region20: #{inception_forward.1} parent=11 // pred_fallthru
        _
      // Predicated region
      $region21: #{inception_forward.1} parent=11 // pred_check
        %p256 = pneg %p104
      $region22: #{inception_forward.1} parent=11 // pred_check_branch
        %258 = sbr.rel (%p256) target = $region24
      $region23: #{inception_forward.1} parent=11 // pred_region
        _
      $region24: #{inception_forward.1} parent=11 // pred_fallthru
        _
      // Predicated region
      $region25: #{inception_forward.1} parent=11 // pred_check
        %p259 = pneg %p125
      $region26: #{inception_forward.1} parent=11 // pred_check_branch
        %261 = sbr.rel (%p259) target = $region28
      $region27: #{inception_forward.1} parent=11 // pred_region
        _
      $region28: #{inception_forward.1} parent=11 // pred_fallthru
        _
      // Predicated region
      $region29: #{inception_forward.1} parent=11 // pred_check
        %p262 = pneg %p146
      $region30: #{inception_forward.1} parent=11 // pred_check_branch
        %264 = sbr.rel (%p262) target = $region32
      $region31: #{inception_forward.1} parent=11 // pred_region
        _
      $region32: #{inception_forward.1} parent=11 // pred_fallthru
        _
      // Predicated region
      $region33: #{inception_forward.1} parent=11 // pred_check
        %p265 = pneg %p167
      $region34: #{inception_forward.1} parent=11 // pred_check_branch
        %267 = sbr.rel (%p265) target = $region36
      $region35: #{inception_forward.1} parent=11 // pred_region
        _
      $region36: #{inception_forward.1} parent=11 // pred_fallthru
        _
      // Predicated region
      $region37: #{inception_forward.1} parent=11 // pred_check
        %p268 = pneg %p188
      $region38: #{inception_forward.1} parent=11 // pred_check_branch
        %270 = sbr.rel (%p268) target = $region40
      $region39: #{inception_forward.1} parent=11 // pred_region
        _
      $region40: #{inception_forward.1} parent=11 // pred_fallthru
        _
      // Predicated region
      $region41: #{inception_forward.1} parent=11 // pred_check
        %p271 = pneg %p209
      $region42: #{inception_forward.1} parent=11 // pred_check_branch
        %273 = sbr.rel (%p271) target = $region44
      $region43: #{inception_forward.1} parent=11 // pred_region
        _
      $region44: #{inception_forward.1} parent=11 // pred_fallthru
        _
    $region12: #{inception_forward.1} parent=5 // pred_fallthru
      _
    %p274 = scmp.lt.s32.totalorder %s15, 2
    // Predicated region
    $region45: #{inception_forward.1} parent=5 // pred_check
      %p275 = pneg %p274
    $region46: #{inception_forward.1} parent=5 // pred_check_branch
      %277 = sbr.rel (%p275) target = $region48
    $region47: #{inception_forward.1} parent=5 // pred_region
      // Predicated region
      $region49: #{inception_forward.1} parent=47 // pred_check
        %p278 = pneg %p35
      $region50: #{inception_forward.1} parent=47 // pred_check_branch
        %280 = sbr.rel (%p278) target = $region52
      $region51: #{inception_forward.1} parent=47 // pred_region
        %p281 = scmp.lt.s32.totalorder %s15, 1
        %s282 = scalar_select %p281, %s15, 1
        %s283 = smul.addr %s282, 2
        %s284 = smul.addr %s283, 2
        %s285 = scalar_lea.vmem %s0, %s284
      $region52: #{inception_forward.1} parent=47 // pred_fallthru
        _
    $region48: #{inception_forward.1} parent=5 // pred_fallthru
      _
    %p286 = scmp.le.s32.totalorder 1, %s15
    %p287 = scmp.lt.s32.totalorder %s15, 3
    %p288 = pnand %p286, %p287
    %p289 = pneg %p288
    // Predicated region
    $region53: #{inception_forward.1} parent=5 // pred_check
      _
    $region54: #{inception_forward.1} parent=5 // pred_check_branch
      %291 = sbr.rel (%p288) target = $region56
    $region55: #{inception_forward.1} parent=5 // pred_region
      %s292 = ssub.s32 %s15, 1
      %p293 = scmp.lt.s32.totalorder %s20, 1
      %s294 = scalar_select %p293, %s20, 1
      %s295 = smul.addr %s294, 2
      %s296 = smul.addr %s295, 2
      %s297 = scalar_lea.vmem %s0, %s296
      %p298 = pneg %p41
      %p299 = pneg %p38
      %p300 = pneg %p62
      %p301 = pneg %p59
      %p302 = pneg %p83
      %p303 = pneg %p80
      %p304 = pneg %p104
      %p305 = pneg %p101
      %p306 = pneg %p125
      %p307 = pneg %p122
      %p308 = pneg %p146
      %p309 = pneg %p143
      %p310 = pneg %p167
      %p311 = pneg %p164
      %p312 = pneg %p188
      %p313 = pneg %p185
      %p314 = pneg %p209
      %p315 = pneg %p206
      %p316 = pneg %p235
      %p317 = pneg %p232
      %p318 = scmp.lt.s32.totalorder %s20, 1
      %s319 = scalar_select %p318, %s20, 1
      %s320 = smul.addr %s319, 8
      %s321 = smul.addr %s320, 8
      %s322 = scalar_lea.vmem %s9, %s321
      %p323 = scmp.lt.s32.totalorder %s20, 1
      %s324 = scalar_select %p323, %s20, 1
      %s325 = smul.addr %s324, 2
      %s326 = smul.addr %s325, 2
      %s327 = scalar_lea.vmem %s0, %s326
      %p328 = scmp.lt.s32.totalorder %s20, 1
      %s329 = scalar_select %p328, %s20, 1
      %s330 = smul.addr %s329, 8
      %s331 = smul.addr %s330, 8
      %s332 = scalar_lea.vmem %s9, %s331
      %v334 = vlaneseq
      %v335 = vand.u32 %v334, 127
      %v336 = vadd.s32 %v335, 128
      %vm337 = vcmp.lt.s32.totalorder %v335, 0
      %v338 = vsub.s32 0, %v335
      %v339 = vsel %vm337, %v338, %v335
      %v340 = vshrl.u32 %v339, 4
      %v341 = vand.u32 %v339, 15
      %v342 = vsub.s32 0, %v341
      %v343 = vsel %vm337, %v342, %v341
      %vm344 = vcmp.lt.s32.totalorder %v336, 0
      %v345 = vsub.s32 0, %v336
      %v346 = vsel %vm344, %v345, %v336
      %v347 = vshrl.u32 %v346, 4
      %v348 = vand.u32 %v346, 15
      %v349 = vsub.s32 0, %v348
      %v350 = vsel %vm344, %v349, %v348
      %vm351 = vcmp.ne.s32.totalorder %v343, 0
      %vm352 = vcmp.ne.s32.totalorder %v350, 0
      %vm353 = vcmp.lt.s32.totalorder %v343, 0
      %vm354 = vcmp.lt.s32.totalorder %v350, 0
      %vm355 = vmand %vm353, %vm351
      %vm356 = vmand %vm354, %vm352
      %v357 = vadd.s32 %v343, 16
      %v358 = vadd.s32 %v350, 16
      %v359 = vsel %vm355, %v357, %v343
      %v360 = vsel %vm356, %v358, %v350
      %v361 = vld [vmem:[%s327] sm:$0xf]
      %v362 = vld [vmem:[%s1] sm:$0xf]
      %v363 = vld [vmem:[%s1 + $0x4] sm:$0xf]
      %v364 = vld [vmem:[%s2] sm:$0xff]
      %v365 = vld [vmem:[%s2 + $0x8] sm:$0xff]
      %367 = vset.pattern.permute.xlu0 0
      %368 = vperm.xlu0 %367, %v364
      %v369 = vpop.permute.xlu0 %368
      %372 = vset.pattern.permute.xlu0 0
      %373 = vperm.xlu0 %372, %v365
      %v374 = vpop.permute.xlu0 %373
      %v378 = vunpack.c.l.b16 %v362
      %v379 = vunpack.c.l.b16 %v363
      %v380 = vpack.c.b16 %v379, %v378
      %v383 = vunpack.c.l.s4 1983009808
      %v384 = vunpack.c.0.s8 %v383
      %v385 = vlaneseq
      %v386 = vshrl.u32 %v385, 7
      %v387 = vsub.s32 %v384, %v386
      %v388 = vrot.slane %v361, %v387
      %v389 = vcombine.high %v388, %v388
      %vm390 = vcmask 31744
      %v392 = vsel %vm390, %v380, 0
      %vm394 = vcmask 1041408
      %v396 = vsel %vm394, %v388, 0
      %v399 = vsel %vm394, %v389, 0
      %401 = vmatprep.subr.bf16.mxu0 %v399
      %402 = vmatpush1.bf16.msra.mxu0 %v396
      %403 = vmatprep.subr.bf16.mxu0 0
      %404 = vmatpush1.bf16.msra.mxu0 0
      %405 = vmatprep.subr.bf16.mxu0 0
      %406 = vmatpush1.bf16.msra.mxu0 0
      %407 = vmatprep.subr.bf16.mxu0 0
      %408 = vmatpush1.bf16.msra.mxu0 0
      %409 = vmatprep.subr.bf16.mxu0 0
      %410 = vmatpush1.bf16.msra.mxu0 0
      %411 = vmatprep.subr.bf16.mxu0 0
      %412 = vmatpush1.bf16.msra.mxu0 0
      %413 = vmatprep.subr.bf16.mxu0 0
      %414 = vmatpush1.bf16.msra.mxu0 0
      %415 = vmatprep.subr.bf16.mxu0 0
      %416 = vmatpush1.bf16.msra.mxu0 0
      %417 = vmatprep.subr.bf16.mxu0 0
      %418 = vmatpush1.bf16.msra.mxu0 0
      %419 = vmatprep.subr.bf16.mxu0 0
      %420 = vmatpush1.bf16.msra.mxu0 0
      %421 = vmatprep.subr.bf16.mxu0 0
      %422 = vmatpush1.bf16.msra.mxu0 0
      %423 = vmatprep.subr.bf16.mxu0 0
      %424 = vmatpush1.bf16.msra.mxu0 0
      %425 = vmatprep.subr.bf16.mxu0 0
      %426 = vmatpush1.bf16.msra.mxu0 0
      %427 = vmatprep.subr.bf16.mxu0 0
      %428 = vmatpush1.bf16.msra.mxu0 0
      %429 = vmatprep.subr.bf16.mxu0 0
      %430 = vmatpush1.bf16.msra.mxu0 0
      %431 = vmatprep.subr.bf16.mxu0 0
      %432 = vmatpush1.bf16.msra.mxu0 0
      %433 = vmatprep.mubr.bf16.mxu0 0
      %434 = vmatmul.mubr.bf16.gmra.mrb[0].mxu0 %v392
      %v435 = vpop.f32.mrb[0].mxu0
      %v436 = vadd.f32 %v369, %v435
      %v437 = vpop.f32.mrb[0].mxu0
      %v438 = vadd.f32 %v369, %v437
      %v439 = vpop.f32.mrb[0].mxu0
      %v440 = vadd.f32 %v374, %v439
      %v441 = vpop.f32.mrb[0].mxu0
      %v442 = vadd.f32 %v374, %v441
      %443 = vdwg.mxu0
      %v444 = vmax.f32 %v436, 0.0
      %v445 = vmax.f32 %v438, 0.0
      %v446 = vmax.f32 %v440, 0.0
      %v447 = vmax.f32 %v442, 0.0
      %450 = vrot.lane.b32.xlu0 %v446, 17
      %v451 = vpop.permute.xlu0 %450
      %452 = vrot.lane.b32.xlu0 %v447, 17
      %v453 = vpop.permute.xlu0 %452
      %vm454 = vcmask 138240
      %v455 = vsel %vm454, %v451, %v453
      %v458 = vsel %vm454, 0.0, %v451
      %v459 = vadd.s32 %v359, 4294967295
      %v460 = vadd.s32 %v360, 4294967295
      %vm461 = vcmp.ge.s32.totalorder %v459, 0
      %vm462 = vcmp.ge.s32.totalorder %v460, 0
      %vm463 = vcmp.lt.s32.totalorder %v459, 16
      %vm464 = vcmp.lt.s32.totalorder %v460, 16
      %vm465 = vmand %vm461, %vm463
      %vm466 = vmand %vm462, %vm464
      %v467 = vsel %vm465, 1, 0
      %v468 = vsel %vm466, 1, 0
      %vm469 = vcmp.eq.s32.totalorder %v467, 1
      %vm470 = vcmp.eq.s32.totalorder %v468, 1
      %v471 = vsel %vm469, %v458, 0.0
      %v472 = vsel %vm470, %v455, 0.0
      %473 = vrot.lane.b32.xlu0 %v446, 16
      %v474 = vpop.permute.xlu0 %473
      %475 = vrot.lane.b32.xlu0 %v447, 16
      %v476 = vpop.permute.xlu0 %475
      %vm477 = vcmask 130048
      %v478 = vsel %vm477, %v474, %v476
      %v480 = vsel %vm477, 0.0, %v474
      %481 = vrot.lane.b32.xlu0 %v446, 15
      %v482 = vpop.permute.xlu0 %481
      %483 = vrot.lane.b32.xlu0 %v447, 15
      %v484 = vpop.permute.xlu0 %483
      %vm485 = vcmask 121856
      %v486 = vsel %vm485, %v482, %v484
      %v489 = vsel %vm485, 0.0, %v482
      %v490 = vadd.s32 %v359, 1
      %v491 = vadd.s32 %v360, 1
      %vm492 = vcmp.ge.s32.totalorder %v490, 0
      %vm493 = vcmp.ge.s32.totalorder %v491, 0
      %vm494 = vcmp.lt.s32.totalorder %v490, 16
      %vm495 = vcmp.lt.s32.totalorder %v491, 16
      %vm496 = vmand %vm492, %vm494
      %vm497 = vmand %vm493, %vm495
      %v498 = vsel %vm496, 1, 0
      %v499 = vsel %vm497, 1, 0
      %vm500 = vcmp.eq.s32.totalorder %v498, 1
      %vm501 = vcmp.eq.s32.totalorder %v499, 1
      %v502 = vsel %vm500, %v489, 0.0
      %v503 = vsel %vm501, %v486, 0.0
      %504 = vrot.lane.b32.xlu0 %v446, 1
      %v505 = vpop.permute.xlu0 %504
      %506 = vrot.lane.b32.xlu0 %v447, 1
      %v507 = vpop.permute.xlu0 %506
      %vm508 = vcmask 7168
      %v509 = vsel %vm508, %v505, %v507
      %v512 = vsel %vm508, 0.0, %v505
      %v513 = vsel %vm469, %v512, 0.0
      %v514 = vsel %vm470, %v509, 0.0
      %515 = vrot.lane.b32.xlu0 %v446, 127
      %v516 = vpop.permute.xlu0 %515
      %517 = vrot.lane.b32.xlu0 %v447, 127
      %v518 = vpop.permute.xlu0 %517
      %vm519 = vcmask 1039360
      %v520 = vsel %vm519, %v516, %v518
      %v523 = vsel %vm519, %v518, 0.0
      %v524 = vsel %vm500, %v520, 0.0
      %v525 = vsel %vm501, %v523, 0.0
      %526 = vrot.lane.b32.xlu0 %v446, 113
      %v527 = vpop.permute.xlu0 %526
      %528 = vrot.lane.b32.xlu0 %v447, 113
      %v529 = vpop.permute.xlu0 %528
      %vm530 = vcmask 924672
      %v531 = vsel %vm530, %v527, %v529
      %v534 = vsel %vm530, %v529, 0.0
      %v535 = vsel %vm469, %v531, 0.0
      %v536 = vsel %vm470, %v534, 0.0
      %537 = vrot.lane.b32.xlu0 %v446, 112
      %v538 = vpop.permute.xlu0 %537
      %539 = vrot.lane.b32.xlu0 %v447, 112
      %v540 = vpop.permute.xlu0 %539
      %vm541 = vcmask 916480
      %v542 = vsel %vm541, %v538, %v540
      %v544 = vsel %vm541, %v540, 0.0
      %545 = vrot.lane.b32.xlu0 %v446, 111
      %v546 = vpop.permute.xlu0 %545
      %547 = vrot.lane.b32.xlu0 %v447, 111
      %v548 = vpop.permute.xlu0 %547
      %vm549 = vcmask 908288
      %v550 = vsel %vm549, %v546, %v548
      %v553 = vsel %vm549, %v548, 0.0
      %v554 = vsel %vm500, %v550, 0.0
      %v555 = vsel %vm501, %v553, 0.0
      %v557 = vrot.slane %v480, 4
      %v558 = vrot.slane %v478, 4
      %v563 = vrot.slane %v513, 4
      %v564 = vrot.slane %v514, 4
      %v569 = vrot.slane %v524, 4
      %v570 = vrot.slane %v525, 4
      %v574 = vrot.slane %v542, 4
      %v575 = vrot.slane %v544, 4
      %vm578 = vcmask 1043456
      %v579 = vsel %vm578, %v471, %v557
      %v580 = vsel %vm578, %v472, %v558
      %v581 = vsel %vm578, %v502, %v563
      %v582 = vsel %vm578, %v503, %v564
      %v583 = vsel %vm578, %v446, %v569
      %v584 = vsel %vm578, %v447, %v570
      %v585 = vsel %vm578, %v535, %v574
      %v586 = vsel %vm578, %v536, %v575
      %v587 = vld [vmem:[%s3] sm:$0xf]
      %v588 = vpack.c.bf16 %v581, %v579
      %v589 = vpack.c.bf16 %v582, %v580
      %v590 = vpack.c.bf16 %v585, %v583
      %v591 = vpack.c.bf16 %v586, %v584
      %v592 = vpack.c.bf16 %v554, %v554
      %v593 = vpack.c.bf16 %v555, %v555
      %v594 = vld [vmem:[%s4] sm:$0xff]
      %596 = vset.pattern.permute.xlu0 0
      %597 = vperm.xlu0 %596, %v594
      %v598 = vpop.permute.xlu0 %597
      %vm600 = vcmask 293888
      %v602 = vsel %vm600, %v587, 0
      %v605 = vsel %vm394, %v592, 0
      %v608 = vsel %vm394, %v593, 0
      %610 = vmatprep.subr.bf16.mxu0 %v589
      %611 = vmatpush1.bf16.msra.mxu0 %v588
      %612 = vmatprep.subr.bf16.mxu0 %v591
      %613 = vmatpush1.bf16.msra.mxu0 %v590
      %614 = vmatprep.subr.bf16.mxu0 %v608
      %615 = vmatpush1.bf16.msra.mxu0 %v605
      %616 = vmatprep.subr.bf16.mxu0 0
      %617 = vmatpush1.bf16.msra.mxu0 0
      %618 = vmatprep.subr.bf16.mxu0 0
      %619 = vmatpush1.bf16.msra.mxu0 0
      %620 = vmatprep.subr.bf16.mxu0 0
      %621 = vmatpush1.bf16.msra.mxu0 0
      %622 = vmatprep.subr.bf16.mxu0 0
      %623 = vmatpush1.bf16.msra.mxu0 0
      %624 = vmatprep.subr.bf16.mxu0 0
      %625 = vmatpush1.bf16.msra.mxu0 0
      %626 = vmatprep.subr.bf16.mxu0 0
      %627 = vmatpush1.bf16.msra.mxu0 0
      %628 = vmatprep.subr.bf16.mxu0 0
      %629 = vmatpush1.bf16.msra.mxu0 0
      %630 = vmatprep.subr.bf16.mxu0 0
      %631 = vmatpush1.bf16.msra.mxu0 0
      %632 = vmatprep.subr.bf16.mxu0 0
      %633 = vmatpush1.bf16.msra.mxu0 0
      %634 = vmatprep.subr.bf16.mxu0 0
      %635 = vmatpush1.bf16.msra.mxu0 0
      %636 = vmatprep.subr.bf16.mxu0 0
      %637 = vmatpush1.bf16.msra.mxu0 0
      %638 = vmatprep.subr.bf16.mxu0 0
      %639 = vmatpush1.bf16.msra.mxu0 0
      %640 = vmatprep.subr.bf16.mxu0 0
      %641 = vmatpush1.bf16.msra.mxu0 0
      %642 = vmatprep.mubr.bf16.mxu0 0
      %643 = vmatmul.mubr.bf16.gmra.mrb[0].mxu0 %v602
      %v644 = vpop.f32.mrb[0].mxu0
      %v645 = vadd.f32 %v598, %v644
      %v646 = vpop.f32.mrb[0].mxu0
      %v647 = vadd.f32 %v598, %v646
      %v648 = vpop.f32.mrb[0].mxu0
      %v649 = vpop.f32.mrb[0].mxu0
      %650 = vdwg.mxu0
      %v651 = vmax.f32 %v645, 0.0
      %v652 = vmax.f32 %v647, 0.0
      %v653 = vrot.slane %v446, 4
      %v654 = vrot.slane %v447, 4
      %655 = vrot.lane.b32.xlu0 %v653, 34
      %v656 = vpop.permute.xlu0 %655
      %657 = vrot.lane.b32.xlu0 %v654, 34
      %v658 = vpop.permute.xlu0 %657
      %vm659 = vcmask 277504
      %v660 = vsel %vm659, %v656, %v658
      %v663 = vsel %vm659, 0.0, %v656
      %v664 = vadd.s32 %v359, 4294967294
      %v665 = vadd.s32 %v360, 4294967294
      %vm666 = vcmp.ge.s32.totalorder %v664, 0
      %vm667 = vcmp.ge.s32.totalorder %v665, 0
      %vm668 = vcmp.lt.s32.totalorder %v664, 16
      %vm669 = vcmp.lt.s32.totalorder %v665, 16
      %vm670 = vmand %vm666, %vm668
      %vm671 = vmand %vm667, %vm669
      %v672 = vsel %vm670, 1, 0
      %v673 = vsel %vm671, 1, 0
      %vm674 = vcmp.eq.s32.totalorder %v672, 1
      %vm675 = vcmp.eq.s32.totalorder %v673, 1
      %v676 = vsel %vm674, %v663, 0.0
      %v677 = vsel %vm675, %v660, 0.0
      %678 = vrot.lane.b32.xlu0 %v653, 33
      %v679 = vpop.permute.xlu0 %678
      %680 = vrot.lane.b32.xlu0 %v654, 33
      %v681 = vpop.permute.xlu0 %680
      %vm682 = vcmask 269312
      %v683 = vsel %vm682, %v679, %v681
      %v686 = vsel %vm682, 0.0, %v679
      %v687 = vsel %vm469, %v686, 0.0
      %v688 = vsel %vm470, %v683, 0.0
      %689 = vrot.lane.b32.xlu0 %v653, 32
      %v690 = vpop.permute.xlu0 %689
      %691 = vrot.lane.b32.xlu0 %v654, 32
      %v692 = vpop.permute.xlu0 %691
      %vm693 = vcmask 261120
      %v694 = vsel %vm693, %v690, %v692
      %v697 = vsel %vm693, 0.0, %v690
      %698 = vrot.lane.b32.xlu0 %v653, 31
      %v699 = vpop.permute.xlu0 %698
      %700 = vrot.lane.b32.xlu0 %v654, 31
      %v701 = vpop.permute.xlu0 %700
      %vm702 = vcmask 252928
      %v703 = vsel %vm702, %v699, %v701
      %v706 = vsel %vm702, 0.0, %v699
      %v707 = vsel %vm500, %v706, 0.0
      %v708 = vsel %vm501, %v703, 0.0
      %709 = vrot.lane.b32.xlu0 %v653, 30
      %v710 = vpop.permute.xlu0 %709
      %711 = vrot.lane.b32.xlu0 %v654, 30
      %v712 = vpop.permute.xlu0 %711
      %vm713 = vcmask 244736
      %v714 = vsel %vm713, %v710, %v712
      %v717 = vsel %vm713, 0.0, %v710
      %v718 = vadd.s32 %v359, 2
      %v719 = vadd.s32 %v360, 2
      %vm720 = vcmp.ge.s32.totalorder %v718, 0
      %vm721 = vcmp.ge.s32.totalorder %v719, 0
      %vm722 = vcmp.lt.s32.totalorder %v718, 16
      %vm723 = vcmp.lt.s32.totalorder %v719, 16
      %vm724 = vmand %vm720, %vm722
      %vm725 = vmand %vm721, %vm723
      %v726 = vsel %vm724, 1, 0
      %v727 = vsel %vm725, 1, 0
      %vm728 = vcmp.eq.s32.totalorder %v726, 1
      %vm729 = vcmp.eq.s32.totalorder %v727, 1
      %v730 = vsel %vm728, %v717, 0.0
      %v731 = vsel %vm729, %v714, 0.0
      %732 = vrot.lane.b32.xlu0 %v653, 18
      %v733 = vpop.permute.xlu0 %732
      %734 = vrot.lane.b32.xlu0 %v654, 18
      %v735 = vpop.permute.xlu0 %734
      %vm736 = vcmask 146432
      %v737 = vsel %vm736, %v733, %v735
      %v740 = vsel %vm736, 0.0, %v733
      %v741 = vsel %vm674, %v740, 0.0
      %v742 = vsel %vm675, %v737, 0.0
      %743 = vrot.lane.b32.xlu0 %v653, 17
      %v744 = vpop.permute.xlu0 %743
      %745 = vrot.lane.b32.xlu0 %v654, 17
      %v746 = vpop.permute.xlu0 %745
      %v747 = vsel %vm454, %v744, %v746
      %v750 = vsel %vm454, 0.0, %v744
      %v751 = vsel %vm469, %v750, 0.0
      %v752 = vsel %vm470, %v747, 0.0
      %753 = vrot.lane.b32.xlu0 %v653, 16
      %v754 = vpop.permute.xlu0 %753
      %755 = vrot.lane.b32.xlu0 %v654, 16
      %v756 = vpop.permute.xlu0 %755
      %v757 = vsel %vm477, %v754, %v756
      %v759 = vsel %vm477, 0.0, %v754
      %760 = vrot.lane.b32.xlu0 %v653, 15
      %v761 = vpop.permute.xlu0 %760
      %762 = vrot.lane.b32.xlu0 %v654, 15
      %v763 = vpop.permute.xlu0 %762
      %v764 = vsel %vm485, %v761, %v763
      %v767 = vsel %vm485, 0.0, %v761
      %v768 = vsel %vm500, %v767, 0.0
      %v769 = vsel %vm501, %v764, 0.0
      %770 = vrot.lane.b32.xlu0 %v653, 14
      %v771 = vpop.permute.xlu0 %770
      %772 = vrot.lane.b32.xlu0 %v654, 14
      %v773 = vpop.permute.xlu0 %772
      %vm774 = vcmask 113664
      %v775 = vsel %vm774, %v771, %v773
      %v778 = vsel %vm774, 0.0, %v771
      %v779 = vsel %vm728, %v778, 0.0
      %v780 = vsel %vm729, %v775, 0.0
      %781 = vrot.lane.b32.xlu0 %v653, 2
      %v782 = vpop.permute.xlu0 %781
      %783 = vrot.lane.b32.xlu0 %v654, 2
      %v784 = vpop.permute.xlu0 %783
      %vm785 = vcmask 15360
      %v786 = vsel %vm785, %v782, %v784
      %v789 = vsel %vm785, 0.0, %v782
      %v790 = vsel %vm674, %v789, 0.0
      %v791 = vsel %vm675, %v786, 0.0
      %792 = vrot.lane.b32.xlu0 %v653, 1
      %v793 = vpop.permute.xlu0 %792
      %794 = vrot.lane.b32.xlu0 %v654, 1
      %v795 = vpop.permute.xlu0 %794
      %v796 = vsel %vm508, %v793, %v795
      %v799 = vsel %vm508, 0.0, %v793
      %v800 = vsel %vm469, %v799, 0.0
      %v801 = vsel %vm470, %v796, 0.0
      %802 = vrot.lane.b32.xlu0 %v446, 126
      %v803 = vpop.permute.xlu0 %802
      %804 = vrot.lane.b32.xlu0 %v447, 126
      %v805 = vpop.permute.xlu0 %804
      %vm806 = vcmask 1031168
      %v807 = vsel %vm806, %v803, %v805
      %v810 = vsel %vm806, %v805, 0.0
      %v811 = vsel %vm728, %v807, 0.0
      %v812 = vsel %vm729, %v810, 0.0
      %813 = vrot.lane.b32.xlu0 %v446, 114
      %v814 = vpop.permute.xlu0 %813
      %815 = vrot.lane.b32.xlu0 %v447, 114
      %v816 = vpop.permute.xlu0 %815
      %vm817 = vcmask 932864
      %v818 = vsel %vm817, %v814, %v816
      %v821 = vsel %vm817, %v816, 0.0
      %v822 = vsel %vm674, %v818, 0.0
      %v823 = vsel %vm675, %v821, 0.0
      %825 = vrot.lane.b32.xlu0 %v446, 110
      %v826 = vpop.permute.xlu0 %825
      %827 = vrot.lane.b32.xlu0 %v447, 110
      %v828 = vpop.permute.xlu0 %827
      %vm829 = vcmask 900096
      %v830 = vsel %vm829, %v826, %v828
      %v833 = vsel %vm829, %v828, 0.0
      %v834 = vsel %vm728, %v830, 0.0
      %v835 = vsel %vm729, %v833, 0.0
      %836 = vrot.lane.b32.xlu0 %v446, 98
      %v837 = vpop.permute.xlu0 %836
      %838 = vrot.lane.b32.xlu0 %v447, 98
      %v839 = vpop.permute.xlu0 %838
      %vm840 = vcmask 801792
      %v841 = vsel %vm840, %v837, %v839
      %v844 = vsel %vm840, %v839, 0.0
      %v845 = vsel %vm674, %v841, 0.0
      %v846 = vsel %vm675, %v844, 0.0
      %847 = vrot.lane.b32.xlu0 %v446, 97
      %v848 = vpop.permute.xlu0 %847
      %849 = vrot.lane.b32.xlu0 %v447, 97
      %v850 = vpop.permute.xlu0 %849
      %vm851 = vcmask 793600
      %v852 = vsel %vm851, %v848, %v850
      %v855 = vsel %vm851, %v850, 0.0
      %v856 = vsel %vm469, %v852, 0.0
      %v857 = vsel %vm470, %v855, 0.0
      %858 = vrot.lane.b32.xlu0 %v446, 96
      %v859 = vpop.permute.xlu0 %858
      %860 = vrot.lane.b32.xlu0 %v447, 96
      %v861 = vpop.permute.xlu0 %860
      %vm862 = vcmask 785408
      %v863 = vsel %vm862, %v859, %v861
      %v865 = vsel %vm862, %v861, 0.0
      %866 = vrot.lane.b32.xlu0 %v446, 95
      %v867 = vpop.permute.xlu0 %866
      %868 = vrot.lane.b32.xlu0 %v447, 95
      %v869 = vpop.permute.xlu0 %868
      %vm870 = vcmask 777216
      %v871 = vsel %vm870, %v867, %v869
      %v874 = vsel %vm870, %v869, 0.0
      %v875 = vsel %vm500, %v871, 0.0
      %v876 = vsel %vm501, %v874, 0.0
      %877 = vrot.lane.b32.xlu0 %v446, 94
      %v878 = vpop.permute.xlu0 %877
      %879 = vrot.lane.b32.xlu0 %v447, 94
      %v880 = vpop.permute.xlu0 %879
      %vm881 = vcmask 769024
      %v882 = vsel %vm881, %v878, %v880
      %v885 = vsel %vm881, %v880, 0.0
      %v886 = vsel %vm728, %v882, 0.0
      %v887 = vsel %vm729, %v885, 0.0
      %v890 = vrot.slane %v687, 4
      %v891 = vrot.slane %v688, 4
      %v896 = vrot.slane %v707, 4
      %v897 = vrot.slane %v708, 4
      %v902 = vrot.slane %v741, 4
      %v903 = vrot.slane %v742, 4
      %v907 = vrot.slane %v759, 4
      %v908 = vrot.slane %v757, 4
      %v913 = vrot.slane %v779, 4
      %v914 = vrot.slane %v780, 4
      %v919 = vrot.slane %v800, 4
      %v920 = vrot.slane %v801, 4
      %v927 = vrot.slane %v811, 4
      %v928 = vrot.slane %v812, 4
      %v931 = vsel %vm578, %v676, %v890
      %v932 = vsel %vm578, %v677, %v891
      %v933 = vsel %vm578, %v697, %v896
      %v934 = vsel %vm578, %v694, %v897
      %v935 = vsel %vm578, %v730, %v902
      %v936 = vsel %vm578, %v731, %v903
      %v937 = vsel %vm578, %v751, %v907
      %v938 = vsel %vm578, %v752, %v908
      %v939 = vsel %vm578, %v768, %v913
      %v940 = vsel %vm578, %v769, %v914
      %v941 = vsel %vm578, %v790, %v919
      %v942 = vsel %vm578, %v791, %v920
      %v943 = vsel %vm578, %v653, %v524
      %v944 = vsel %vm578, %v654, %v525
      %v945 = vsel %vm578, %v927, %v822
      %v946 = vsel %vm578, %v928, %v823
      %v949 = vrot.slane %v535, 4
      %v950 = vrot.slane %v536, 4
      %v955 = vrot.slane %v554, 4
      %v956 = vrot.slane %v555, 4
      %v961 = vrot.slane %v845, 4
      %v962 = vrot.slane %v846, 4
      %v966 = vrot.slane %v863, 4
      %v967 = vrot.slane %v865, 4
      %v972 = vrot.slane %v886, 4
      %v973 = vrot.slane %v887, 4
      %v976 = vsel %vm578, %v949, %v542
      %v977 = vsel %vm578, %v950, %v544
      %v978 = vsel %vm578, %v955, %v834
      %v979 = vsel %vm578, %v956, %v835
      %v980 = vsel %vm578, %v961, %v856
      %v981 = vsel %vm578, %v962, %v857
      %v982 = vsel %vm578, %v966, %v875
      %v983 = vsel %vm578, %v967, %v876
      %v984 = vld [vmem:[%s5] sm:$0xf]
      %v985 = vpack.c.bf16 %v933, %v931
      %v986 = vpack.c.bf16 %v934, %v932
      %v987 = vpack.c.bf16 %v937, %v935
      %v988 = vpack.c.bf16 %v938, %v936
      %v989 = vpack.c.bf16 %v941, %v939
      %v990 = vpack.c.bf16 %v942, %v940
      %v991 = vpack.c.bf16 %v945, %v943
      %v992 = vpack.c.bf16 %v946, %v944
      %v993 = vpack.c.bf16 %v978, %v976
      %v994 = vpack.c.bf16 %v979, %v977
      %v995 = vpack.c.bf16 %v982, %v980
      %v996 = vpack.c.bf16 %v983, %v981
      %v997 = vpack.c.bf16 %v972, %v972
      %v998 = vpack.c.bf16 %v973, %v973
      %v999 = vld [vmem:[%s6] sm:$0xff]
      %1001 = vset.pattern.permute.xlu0 0
      %1002 = vperm.xlu0 %1001, %v999
      %v1003 = vpop.permute.xlu0 %1002
      %vm1005 = vcmask 818176
      %v1007 = vsel %vm1005, %v984, 0
      %v1010 = vsel %vm394, %v997, 0
      %v1013 = vsel %vm394, %v998, 0
      %1015 = vmatprep.subr.bf16.mxu0 %v986
      %1016 = vmatpush1.bf16.msra.mxu0 %v985
      %1017 = vmatprep.subr.bf16.mxu0 %v988
      %1018 = vmatpush1.bf16.msra.mxu0 %v987
      %1019 = vmatprep.subr.bf16.mxu0 %v990
      %1020 = vmatpush1.bf16.msra.mxu0 %v989
      %1021 = vmatprep.subr.bf16.mxu0 %v992
      %1022 = vmatpush1.bf16.msra.mxu0 %v991
      %1023 = vmatprep.subr.bf16.mxu0 %v994
      %1024 = vmatpush1.bf16.msra.mxu0 %v993
      %1025 = vmatprep.subr.bf16.mxu0 %v996
      %1026 = vmatpush1.bf16.msra.mxu0 %v995
      %1027 = vmatprep.subr.bf16.mxu0 %v1013
      %1028 = vmatpush1.bf16.msra.mxu0 %v1010
      %1029 = vmatprep.subr.bf16.mxu0 0
      %1030 = vmatpush1.bf16.msra.mxu0 0
      %1031 = vmatprep.subr.bf16.mxu0 0
      %1032 = vmatpush1.bf16.msra.mxu0 0
      %1033 = vmatprep.subr.bf16.mxu0 0
      %1034 = vmatpush1.bf16.msra.mxu0 0
      %1035 = vmatprep.subr.bf16.mxu0 0
      %1036 = vmatpush1.bf16.msra.mxu0 0
      %1037 = vmatprep.subr.bf16.mxu0 0
      %1038 = vmatpush1.bf16.msra.mxu0 0
      %1039 = vmatprep.subr.bf16.mxu0 0
      %1040 = vmatpush1.bf16.msra.mxu0 0
      %1041 = vmatprep.subr.bf16.mxu0 0
      %1042 = vmatpush1.bf16.msra.mxu0 0
      %1043 = vmatprep.subr.bf16.mxu0 0
      %1044 = vmatpush1.bf16.msra.mxu0 0
      %1045 = vmatprep.subr.bf16.mxu0 0
      %1046 = vmatpush1.bf16.msra.mxu0 0
      %1047 = vmatprep.mubr.bf16.mxu0 0
      %1048 = vmatmul.mubr.bf16.gmra.mrb[0].mxu0 %v1007
      %v1049 = vpop.f32.mrb[0].mxu0
      %v1050 = vadd.f32 %v1003, %v1049
      %v1051 = vpop.f32.mrb[0].mxu0
      %v1052 = vadd.f32 %v1003, %v1051
      %v1053 = vpop.f32.mrb[0].mxu0
      %v1054 = vpop.f32.mrb[0].mxu0
      %1055 = vdwg.mxu0
      %v1056 = vmax.f32 %v1050, 0.0
      %v1057 = vmax.f32 %v1052, 0.0
      %v1058 = vunpack.c.l.bf16 %v361
      %v1060 = vcombine.high %v1058, %v1058
      %1061 = vrot.lane.b32.xlu0 %v1058, 17
      %v1062 = vpop.permute.xlu0 %1061
      %1063 = vrot.lane.b32.xlu0 %v1060, 17
      %v1064 = vpop.permute.xlu0 %1063
      %v1065 = vsel %vm454, %v1062, %v1064
      %v1068 = vsel %vm454, -inf, %v1062
      %v1069 = vsel %vm469, %v1068, -inf
      %v1070 = vsel %vm470, %v1065, -inf
      %1071 = vrot.lane.b32.xlu0 %v1058, 16
      %v1072 = vpop.permute.xlu0 %1071
      %1073 = vrot.lane.b32.xlu0 %v1060, 16
      %v1074 = vpop.permute.xlu0 %1073
      %v1075 = vsel %vm477, %v1072, %v1074
      %v1078 = vsel %vm477, -inf, %v1072
      %1079 = vrot.lane.b32.xlu0 %v1058, 15
      %v1080 = vpop.permute.xlu0 %1079
      %1081 = vrot.lane.b32.xlu0 %v1060, 15
      %v1082 = vpop.permute.xlu0 %1081
      %v1083 = vsel %vm485, %v1080, %v1082
      %v1086 = vsel %vm485, -inf, %v1080
      %v1087 = vsel %vm500, %v1086, -inf
      %v1088 = vsel %vm501, %v1083, -inf
      %1089 = vrot.lane.b32.xlu0 %v1058, 1
      %v1090 = vpop.permute.xlu0 %1089
      %1091 = vrot.lane.b32.xlu0 %v1060, 1
      %v1092 = vpop.permute.xlu0 %1091
      %v1093 = vsel %vm508, %v1090, %v1092
      %v1096 = vsel %vm508, -inf, %v1090
      %v1097 = vsel %vm469, %v1096, -inf
      %v1098 = vsel %vm470, %v1093, -inf
      %1099 = vrot.lane.b32.xlu0 %v1058, 127
      %v1100 = vpop.permute.xlu0 %1099
      %1101 = vrot.lane.b32.xlu0 %v1060, 127
      %v1102 = vpop.permute.xlu0 %1101
      %v1103 = vsel %vm519, %v1100, %v1102
      %v1106 = vsel %vm519, %v1102, -inf
      %v1107 = vsel %vm500, %v1103, -inf
      %v1108 = vsel %vm501, %v1106, -inf
      %1109 = vrot.lane.b32.xlu0 %v1058, 113
      %v1110 = vpop.permute.xlu0 %1109
      %1111 = vrot.lane.b32.xlu0 %v1060, 113
      %v1112 = vpop.permute.xlu0 %1111
      %v1113 = vsel %vm530, %v1110, %v1112
      %v1116 = vsel %vm530, %v1112, -inf
      %v1117 = vsel %vm469, %v1113, -inf
      %v1118 = vsel %vm470, %v1116, -inf
      %1119 = vrot.lane.b32.xlu0 %v1058, 112
      %v1120 = vpop.permute.xlu0 %1119
      %1121 = vrot.lane.b32.xlu0 %v1060, 112
      %v1122 = vpop.permute.xlu0 %1121
      %v1123 = vsel %vm541, %v1120, %v1122
      %v1126 = vsel %vm541, %v1122, -inf
      %1127 = vrot.lane.b32.xlu0 %v1058, 111
      %v1128 = vpop.permute.xlu0 %1127
      %1129 = vrot.lane.b32.xlu0 %v1060, 111
      %v1130 = vpop.permute.xlu0 %1129
      %v1131 = vsel %vm549, %v1128, %v1130
      %v1134 = vsel %vm549, %v1130, -inf
      %v1135 = vsel %vm500, %v1131, -inf
      %v1136 = vsel %vm501, %v1134, -inf
      %v1137 = vmax.f32 %v1069, %v1078
      %v1138 = vmax.f32 %v1070, %v1075
      %v1139 = vmax.f32 %v1137, %v1087
      %v1140 = vmax.f32 %v1138, %v1088
      %v1141 = vmax.f32 %v1139, %v1097
      %v1142 = vmax.f32 %v1140, %v1098
      %v1144 = vmax.f32 %v1141, %v1058
      %v1145 = vmax.f32 %v1142, %v1060
      %v1146 = vmax.f32 %v1144, %v1107
      %v1147 = vmax.f32 %v1145, %v1108
      %v1148 = vmax.f32 %v1146, %v1117
      %v1149 = vmax.f32 %v1147, %v1118
      %v1150 = vmax.f32 %v1148, %v1123
      %v1151 = vmax.f32 %v1149, %v1126
      %v1152 = vmax.f32 %v1150, %v1135
      %v1153 = vmax.f32 %v1151, %v1136
      %v1154 = vld [vmem:[%s7] sm:$0xf]
      %v1155 = vpack.c.bf16 %v1152, %v1152
      %v1156 = vpack.c.bf16 %v1153, %v1153
      %v1157 = vld [vmem:[%s8] sm:$0xff]
      %1159 = vset.pattern.permute.xlu0 0
      %1160 = vperm.xlu0 %1159, %v1157
      %v1161 = vpop.permute.xlu0 %1160
      %v1164 = vsel %vm390, %v1154, 0
      %v1167 = vsel %vm394, %v1155, 0
      %v1170 = vsel %vm394, %v1156, 0
      %1172 = vmatprep.subr.bf16.mxu0 %v1170
      %1173 = vmatpush1.bf16.msra.mxu0 %v1167
      %1174 = vmatprep.subr.bf16.mxu0 0
      %1175 = vmatpush1.bf16.msra.mxu0 0
      %1176 = vmatprep.subr.bf16.mxu0 0
      %1177 = vmatpush1.bf16.msra.mxu0 0
      %1178 = vmatprep.subr.bf16.mxu0 0
      %1179 = vmatpush1.bf16.msra.mxu0 0
      %1180 = vmatprep.subr.bf16.mxu0 0
      %1181 = vmatpush1.bf16.msra.mxu0 0
      %1182 = vmatprep.subr.bf16.mxu0 0
      %1183 = vmatpush1.bf16.msra.mxu0 0
      %1184 = vmatprep.subr.bf16.mxu0 0
      %1185 = vmatpush1.bf16.msra.mxu0 0
      %1186 = vmatprep.subr.bf16.mxu0 0
      %1187 = vmatpush1.bf16.msra.mxu0 0
      %1188 = vmatprep.subr.bf16.mxu0 0
      %1189 = vmatpush1.bf16.msra.mxu0 0
      %1190 = vmatprep.subr.bf16.mxu0 0
      %1191 = vmatpush1.bf16.msra.mxu0 0
      %1192 = vmatprep.subr.bf16.mxu0 0
      %1193 = vmatpush1.bf16.msra.mxu0 0
      %1194 = vmatprep.subr.bf16.mxu0 0
      %1195 = vmatpush1.bf16.msra.mxu0 0
      %1196 = vmatprep.subr.bf16.mxu0 0
      %1197 = vmatpush1.bf16.msra.mxu0 0
      %1198 = vmatprep.subr.bf16.mxu0 0
      %1199 = vmatpush1.bf16.msra.mxu0 0
      %1200 = vmatprep.subr.bf16.mxu0 0
      %1201 = vmatpush1.bf16.msra.mxu0 0
      %1202 = vmatprep.subr.bf16.mxu0 0
      %1203 = vmatpush1.bf16.msra.mxu0 0
      %1204 = vmatprep.mubr.bf16.mxu0 0
      %1205 = vmatmul.mubr.bf16.gmra.mrb[0].mxu0 %v1164
      %v1206 = vpop.f32.mrb[0].mxu0
      %v1207 = vadd.f32 %v1161, %v1206
      %v1208 = vpop.f32.mrb[0].mxu0
      %v1209 = vadd.f32 %v1161, %v1208
      %v1210 = vpop.f32.mrb[0].mxu0
      %v1211 = vpop.f32.mrb[0].mxu0
      %1212 = vdwg.mxu0
      %v1213 = vmax.f32 %v1207, 0.0
      %v1214 = vmax.f32 %v1209, 0.0
      %1215 = vst [vmem:[%s332] sm:$0xff] %v444
      %1216 = vst [vmem:[%s332 + $0x8] sm:$0xff] %v445
      %1217 = vst [vmem:[%s332 + $0x10] sm:$0xff] %v651
      %1218 = vst [vmem:[%s332 + $0x18] sm:$0xff] %v652
      %1219 = vst [vmem:[%s332 + $0x20] sm:$0xff] %v1056
      %1220 = vst [vmem:[%s332 + $0x28] sm:$0xff] %v1057
      %1221 = vst [vmem:[%s332 + $0x30] sm:$0xff] %v1213
      %1222 = vst [vmem:[%s332 + $0x38] sm:$0xff] %v1214
      %p1223 = scmp.lt.s32.totalorder %s20, 1
      %s1224 = scalar_select %p1223, %s20, 1
      %s1225 = smul.addr %s1224, 8
      %s1226 = smul.addr %s1225, 8
      %s1227 = scalar_lea.vmem %s9, %s1226
      // Predicated region
      $region57: #{inception_forward.1} parent=55 // pred_check
        %p1228 = pneg %p232
      $region58: #{inception_forward.1} parent=55 // pred_check_branch
        %1230 = sbr.rel (%p1228) target = $region60
      $region59: #{inception_forward.1} parent=55 // pred_region
        _
      $region60: #{inception_forward.1} parent=55 // pred_fallthru
        _
    $region56: #{inception_forward.1} parent=5 // pred_fallthru
      _
    %p1231 = scmp.le.s32.totalorder 2, %s15
    // Predicated region
    $region61: #{inception_forward.1} parent=5 // pred_check
      %p1232 = pneg %p1231
    $region62: #{inception_forward.1} parent=5 // pred_check_branch
      %1234 = sbr.rel (%p1232) target = $region64
    $region63: #{inception_forward.1} parent=5 // pred_region
      %s1235 = ssub.s32 %s15, 2
      // Predicated region
      $region65: #{inception_forward.1} parent=63 // pred_check
        %p1236 = pneg %p238
      $region66: #{inception_forward.1} parent=63 // pred_check_branch
        %1238 = sbr.rel (%p1236) target = $region68
      $region67: #{inception_forward.1} parent=63 // pred_region
        %p1239 = scmp.lt.s32.totalorder %s21, 1
        %s1240 = scalar_select %p1239, %s21, 1
        %s1241 = smul.addr %s1240, 8
        %s1242 = smul.addr %s1241, 8
        %s1243 = scalar_lea.vmem %s9, %s1242
      $region68: #{inception_forward.1} parent=63 // pred_fallthru
        _
    $region64: #{inception_forward.1} parent=5 // pred_fallthru
      _
  $region6: #{inception_forward.1} parent=0 // loop_footer
    %s19 = sadd.s32 1, %s15
  $region7: #{inception_forward.1} parent=0 // loop_footer_branch
    %14 = sbr.rel target = $region3
  $region8: #{inception_forward.1} parent=0 // loop_exit
    _

</llo_original>
